<compile_context>
chip_gen: v7x
topology: tpu7x:2x2x1
jax: 0.10.0
libtpu: 0.0.40
codegen_flags: <defaults>
</compile_context>

<pallas_src>
import math
import functools

import jax
import jax.numpy as jnp
import numpy as np
from jax.experimental import pallas as pl
from jax.experimental.pallas import tpu as pltpu

PAD = 0  # onmt.Constants.PAD


# ---------------------------------------------------------------------------
# Pallas kernel: one LSTM layer, one direction per grid step (grid=(num_dirs,)).
# Time recurrence is an unrolled fori_loop inside the kernel; h/c carried in vregs.
# ---------------------------------------------------------------------------
def lstm_layer_kernel(len_ref, x_ref, w_ref, b_ref, out_ref, hT_ref, cT_ref):
    S, B, _ = x_ref.shape
    H = hT_ref.shape[-1]

    d = pl.program_id(0)
    reverse = d > 0                       # direction 1 walks the sequence right-to-left

    lengths = len_ref[...]                # (B, 1) int32
    w = w_ref[...]                        # (Din + H, 4H), gate columns [i, f, o, g]
    b = b_ref[...]                        # (1, 4H)

    def step(t, carry):
        h, c = carry                                        # (B, H) f32 each
        s = jnp.where(reverse, S - 1 - t, t)                # original time index
        x_t = x_ref[s]                                      # (B, Din)

        inp = jnp.concatenate([x_t, h], axis=-1)            # (B, Din + H)
        gates = jnp.dot(inp, w, preferred_element_type=jnp.float32) + b   # (B, 4H)

        sg = jax.nn.sigmoid(gates[:, :3 * H])               # i, f, o in one EUP call
        g_g = jnp.tanh(gates[:, 3 * H:])                    # g in one EUP call
        i_g = sg[:, :H]
        f_g = sg[:, H:2 * H]
        o_g = sg[:, 2 * H:3 * H]

        c_new = f_g * c + i_g * g_g
        h_new = o_g * jnp.tanh(c_new)

        active = s < lengths                                # (B, 1) bool
        c = jnp.where(active, c_new, c)                     # freeze state past seq end
        h = jnp.where(active, h_new, h)
        out_ref[s] = jnp.where(active, h_new, 0.0).astype(out_ref.dtype)  # pad -> zeros
        return h, c

    h0 = jnp.zeros((B, H), jnp.float32)
    c0 = jnp.zeros((B, H), jnp.float32)
    hT, cT = jax.lax.fori_loop(0, S, step, (h0, c0), unroll=True)

    hT_ref[...] = hT.astype(hT_ref.dtype)
    cT_ref[...] = cT.astype(cT_ref.dtype)


def _permute_ifgo_to_ifog(a, H):
    """Reorder gate columns [i, f, g, o] -> [i, f, o, g] along the last axis (size 4H)."""
    return jnp.concatenate([a[..., :2 * H], a[..., 3 * H:], a[..., 2 * H:3 * H]], axis=-1)


def run_lstm_layer(x, lengths, layer_params, *, hidden_size):
    """x: (S, B, Din) time-major; lengths: (B,) int32; layer_params: list over directions of
    (w_ih (4H,Din), w_hh (4H,H), b_ih (4H,), b_hh (4H,)).
    Returns out (D, S, B, H), hT (D, B, H), cT (D, B, H)."""
    S, B, Din = x.shape
    H = hidden_size
    D = len(layer_params)

    Ws, bs = [], []
    for (w_ih, w_hh, b_ih, b_hh) in layer_params:
        w = jnp.concatenate([w_ih.T, w_hh.T], axis=0).astype(jnp.float32)   # (Din+H, 4H)
        bias = (b_ih + b_hh).astype(jnp.float32).reshape(1, 4 * H)          # (1, 4H)
        Ws.append(_permute_ifgo_to_ifog(w, H))
        bs.append(_permute_ifgo_to_ifog(bias, H))
    W = jnp.stack(Ws, axis=0)                                               # (D, Din+H, 4H)
    Bb = jnp.stack(bs, axis=0)                                              # (D, 1, 4H)

    out_shapes = (
        jax.ShapeDtypeStruct((D, S, B, H), jnp.float32),   # per-step outputs per direction
        jax.ShapeDtypeStruct((D, B, H), jnp.float32),      # final h per direction
        jax.ShapeDtypeStruct((D, B, H), jnp.float32),      # final c per direction
    )
    grid_spec = pltpu.PrefetchScalarGridSpec(
        num_scalar_prefetch=0,
        grid=(D,),
        in_specs=[
            pl.BlockSpec((B, 1), lambda d: (0, 0)),                       # lengths
            pl.BlockSpec((S, B, Din), lambda d: (0, 0, 0)),               # x (shared by dirs)
            pl.BlockSpec((None, Din + H, 4 * H), lambda d: (d, 0, 0)),    # stacked weights
            pl.BlockSpec((None, 1, 4 * H), lambda d: (d, 0, 0)),          # bias
        ],
        out_specs=[
            pl.BlockSpec((None, S, B, H), lambda d: (d, 0, 0, 0)),
            pl.BlockSpec((None, B, H), lambda d: (d, 0, 0)),
            pl.BlockSpec((None, B, H), lambda d: (d, 0, 0)),
        ],
    )
    return pl.pallas_call(
        lstm_layer_kernel,
        out_shape=out_shapes,
        grid_spec=grid_spec,
        compiler_params=pltpu.CompilerParams(dimension_semantics=("parallel",)),
    )(lengths.reshape(B, 1).astype(jnp.int32), x.astype(jnp.float32), W, Bb)


# ---------------------------------------------------------------------------
# Encoder forward (glue in plain JAX; LSTM hot-path in Pallas).
# ---------------------------------------------------------------------------
def encoder_forward(params, input_ids, input_rb, *, layers, num_dirs, hidden_size):
    B, S = input_ids.shape
    # rb_init_token=False and rb_lut is None in this config -> input_rb unused.
    emb = jnp.take(params["word_lut"], input_ids, axis=0)      # (B, S, D)
    emb = jnp.transpose(emb, (1, 0, 2))                        # (S, B, D) time-major

    lengths = jnp.sum((input_ids != PAD).astype(jnp.int32), axis=1)   # (B,)

    x = emb
    h_list, c_list = [], []
    for l in range(layers):
        layer_params = [params["rnn"][(l, d)] for d in range(num_dirs)]
        out, hT, cT = run_lstm_layer(x, lengths, layer_params, hidden_size=hidden_size)
        x = jnp.concatenate([out[d] for d in range(num_dirs)], axis=-1)   # (S, B, D*H)
        for d in range(num_dirs):
            h_list.append(hT[d])
            c_list.append(cT[d])
        # TODO(synk): nn.LSTM inter-layer dropout omitted (opt.dropout = 0.0 here).
    outputs = x                                              # (S, B, num_dirs*H)
    h_n = jnp.stack(h_list, axis=0)                          # (layers*num_dirs, B, H)
    c_n = jnp.stack(c_list, axis=0)
    return (h_n, c_n), outputs


# ---------------------------------------------------------------------------
# Pure-JAX reference (lax.scan, original [i,f,g,o] gate order) for correctness checking.
# ---------------------------------------------------------------------------
def ref_lstm_direction(x, mask, w_ih, w_hh, b_ih, b_hh):
    H = w_hh.shape[1]

    def step(carry, inp):
        h, c = carry
        xt, mt = inp
        gates = xt @ w_ih.T + h @ w_hh.T + b_ih + b_hh
        i = jax.nn.sigmoid(gates[:, :H]); f = jax.nn.sigmoid(gates[:, H:2 * H])
        g = jnp.tanh(gates[:, 2 * H:3 * H]); o = jax.nn.sigmoid(gates[:, 3 * H:])
        c_new = f * c + i * g
        h_new = o * jnp.tanh(c_new)
        c = jnp.where(mt > 0, c_new, c)
        h = jnp.where(mt > 0, h_new, h)
        return (h, c), jnp.where(mt > 0, h_new, 0.0)

    B = x.shape[1]
    init = (jnp.zeros((B, H)), jnp.zeros((B, H)))
    (hT, cT), out = jax.lax.scan(step, init, (x, mask))
    return out, hT, cT


def ref_encoder_forward(params, input_ids, input_rb, *, layers, num_dirs, hidden_size):
    B, S = input_ids.shape
    emb = jnp.transpose(jnp.take(params["word_lut"], input_ids, axis=0), (1, 0, 2))
    lengths = jnp.sum((input_ids != PAD).astype(jnp.int32), axis=1)
    mask = (jnp.arange(S)[:, None] < lengths[None, :]).astype(jnp.float32)[..., None]
    x = emb
    h_list, c_list = [], []
    for l in range(layers):
        outs = []
        for d in range(num_dirs):
            w_ih, w_hh, b_ih, b_hh = params["rnn"][(l, d)]
            if d == 0:
                o, hT, cT = ref_lstm_direction(x, mask, w_ih, w_hh, b_ih, b_hh)
            else:
                o_r, hT, cT = ref_lstm_direction(x[::-1], mask[::-1], w_ih, w_hh, b_ih, b_hh)
                o = o_r[::-1]
            outs.append(o); h_list.append(hT); c_list.append(cT)
        x = jnp.concatenate(outs, axis=-1)
    return (jnp.stack(h_list, 0), jnp.stack(c_list, 0)), x


# ---------------------------------------------------------------------------
# Deterministic parameter construction (matches nn.Embedding / nn.LSTM shapes).
# ---------------------------------------------------------------------------
def make_params(key, *, vocab, word_vec, layers, num_dirs, hidden_size):
    k_emb, k_rnn = jax.random.split(key)
    word_lut = 0.1 * jax.random.normal(k_emb, (vocab, word_vec), jnp.float32)
    word_lut = word_lut.at[PAD].set(0.0)   # padding_idx=PAD

    bound = 1.0 / math.sqrt(hidden_size)
    rnn = {}
    for l in range(layers):
        din = word_vec if l == 0 else num_dirs * hidden_size
        for d in range(num_dirs):
            k_rnn, k1, k2, k3, k4 = jax.random.split(k_rnn, 5)
            rnn[(l, d)] = (
                jax.random.uniform(k1, (4 * hidden_size, din), jnp.float32, -bound, bound),
                jax.random.uniform(k2, (4 * hidden_size, hidden_size), jnp.float32, -bound, bound),
                jax.random.uniform(k3, (4 * hidden_size,), jnp.float32, -bound, bound),
                jax.random.uniform(k4, (4 * hidden_size,), jnp.float32, -bound, bound),
            )
    return {"word_lut": word_lut, "rnn": rnn}


if __name__ == "__main__":
    # opt: layers=2, brnn=True, rnn_size=32 -> hidden=16, word_vec_size=32, dropout=0.0,
    #      rb_init_token=False, num_rb_bin=0 (rb_lut=None); dicts.size()=50.
    layers, num_dirs, hidden_size, word_vec, vocab = 2, 2, 16, 32, 50
    B, S = 2, 8

    key = jax.random.PRNGKey(0)
    k_p, k_tok = jax.random.split(key)
    params = make_params(k_p, vocab=vocab, word_vec=word_vec, layers=layers,
                         num_dirs=num_dirs, hidden_size=hidden_size)

    tokens = jax.random.randint(k_tok, (B, S), 1, vocab, dtype=jnp.int32)
    # second sequence has length 5 (trailing PAD), first has full length 8
    tokens = tokens.at[1, 5:].set(PAD)
    input_rb = jnp.zeros((B,), jnp.int32)   # unused in this config

    encoder_fn = jax.jit(functools.partial(encoder_forward, layers=layers,
                                           num_dirs=num_dirs, hidden_size=hidden_size))
    (h_n, c_n), outputs = encoder_fn(params, tokens, input_rb)
    jax.block_until_ready((h_n, c_n, outputs))

    (h_ref, c_ref), out_ref = ref_encoder_forward(params, tokens, input_rb,
                                                  layers=layers, num_dirs=num_dirs,
                                                  hidden_size=hidden_size)
    np.testing.assert_allclose(np.asarray(outputs), np.asarray(out_ref), rtol=2e-2, atol=2e-2)
    np.testing.assert_allclose(np.asarray(h_n), np.asarray(h_ref), rtol=2e-2, atol=2e-2)
    np.testing.assert_allclose(np.asarray(c_n), np.asarray(c_ref), rtol=2e-2, atol=2e-2)

    assert outputs.shape == (S, B, num_dirs * hidden_size)
    assert h_n.shape == (layers * num_dirs, B, hidden_size)
    print("KERNEL_OK")
</pallas_src>

<mosaic_0001>
module attributes {stable_mosaic.version = 11 : i64} {
  func.func @lstm_layer_kernel(%arg0: i32, %arg1: memref<2x1xi32, #tpu.memory_space<vmem>>, %arg2: memref<8x2x32xf32, #tpu.memory_space<vmem>>, %arg3: memref<1x48x64xf32, #tpu.memory_space<vmem>>, %arg4: memref<1x1x64xf32, #tpu.memory_space<vmem>>, %arg5: memref<1x8x2x16xf32, #tpu.memory_space<vmem>>, %arg6: memref<1x2x16xf32, #tpu.memory_space<vmem>>, %arg7: memref<1x2x16xf32, #tpu.memory_space<vmem>>) attributes {dimension_semantics = [#tpu.dimension_semantics<parallel>], iteration_bounds = array<i64: 2>, scalar_prefetch = 0 : i64, scratch_operands = 0 : i64, tpu.core_type = #tpu.core_type<tc>, window_params = [{pipeline_mode = #tpu.pipeline_mode<synchronous>, transform_indices = @transform_0, window_bounds = array<i64: 2, 1>}, {pipeline_mode = #tpu.pipeline_mode<synchronous>, transform_indices = @transform_1, window_bounds = array<i64: 8, 2, 32>}, {transform_indices = @transform_2, window_bounds = array<i64: 1, 48, 64>}, {transform_indices = @transform_3, window_bounds = array<i64: 1, 1, 64>}, {transform_indices = @transform_4, window_bounds = array<i64: 1, 8, 2, 16>}, {transform_indices = @transform_5, window_bounds = array<i64: 1, 2, 16>}, {transform_indices = @transform_6, window_bounds = array<i64: 1, 2, 16>}]} {
    %c0_i32 = arith.constant 0 : i32
    %0 = arith.cmpi sgt, %arg0, %c0_i32 : i32
    %c0 = arith.constant 0 : index
    %c0_0 = arith.constant 0 : index
    %1 = vector.load %arg1[%c0, %c0_0] : memref<2x1xi32, #tpu.memory_space<vmem>>, vector<2x1xi32>
    %c0_1 = arith.constant 0 : index
    %c0_2 = arith.constant 0 : index
    %c0_3 = arith.constant 0 : index
    %2 = vector.load %arg3[%c0_1, %c0_2, %c0_3] : memref<1x48x64xf32, #tpu.memory_space<vmem>>, vector<1x48x64xf32>
    %3 = vector.shape_cast %2 : vector<1x48x64xf32> to vector<48x64xf32>
    %c0_4 = arith.constant 0 : index
    %c0_5 = arith.constant 0 : index
    %c0_6 = arith.constant 0 : index
    %4 = vector.load %arg4[%c0_4, %c0_5, %c0_6] : memref<1x1x64xf32, #tpu.memory_space<vmem>>, vector<1x1x64xf32>
    %5 = vector.shape_cast %4 : vector<1x1x64xf32> to vector<1x64xf32>
    %cst = arith.constant 0.000000e+00 : f32
    %6 = vector.broadcast %cst : f32 to vector<2x16xf32>
    %cst_7 = arith.constant 0.000000e+00 : f32
    %7 = vector.broadcast %cst_7 : f32 to vector<2x16xf32>
    %c0_i32_8 = arith.constant 0 : i32
    %c7_i32 = arith.constant 7 : i32
    %8 = arith.subi %c7_i32, %c0_i32_8 : i32
    %9 = arith.select %0, %8, %c0_i32_8 : i32
    %10 = arith.index_cast %9 : i32 to index
    %c0_9 = arith.constant 0 : index
    %c0_10 = arith.constant 0 : index
    %11 = vector.load %arg2[%10, %c0_9, %c0_10] : memref<8x2x32xf32, #tpu.memory_space<vmem>>, vector<1x2x32xf32>
    %12 = vector.shape_cast %11 : vector<1x2x32xf32> to vector<2x32xf32>
    %13 = tpu.concatenate %12, %6 in 1 : vector<2x32xf32>, vector<2x16xf32> -> vector<2x48xf32>
    %cst_11 = arith.constant dense<0.000000e+00> : vector<2x64xf32>
    %14 = tpu.matmul %13, %3, %cst_11 {dimension_numbers = #tpu.dot_dimension_numbers<[1], [0], [0], [1], [0, 0, 1, 1], [], []>} : vector<2x48xf32>, vector<48x64xf32>, vector<2x64xf32> -> vector<2x64xf32>
    %15 = vector.broadcast %5 : vector<1x64xf32> to vector<2x64xf32>
    %16 = arith.addf %14, %15 : vector<2x64xf32>
    %17 = vector.extract_strided_slice %16 {offsets = [0, 0], sizes = [2, 48], strides = [1, 1]} : vector<2x64xf32> to vector<2x48xf32>
    %18 = arith.negf %17 : vector<2x48xf32>
    %19 = math.exp %18 : vector<2x48xf32>
    %cst_12 = arith.constant 1.000000e+00 : f32
    %20 = vector.broadcast %cst_12 : f32 to vector<2x48xf32>
    %21 = arith.addf %20, %19 : vector<2x48xf32>
    %22 = arith.divf %20, %21 : vector<2x48xf32>
    %23 = vector.extract_strided_slice %16 {offsets = [0, 48], sizes = [2, 16], strides = [1, 1]} : vector<2x64xf32> to vector<2x16xf32>
    %24 = math.tanh %23 : vector<2x16xf32>
    %25 = vector.extract_strided_slice %22 {offsets = [0, 0], sizes = [2, 16], strides = [1, 1]} : vector<2x48xf32> to vector<2x16xf32>
    %26 = vector.extract_strided_slice %22 {offsets = [0, 16], sizes = [2, 16], strides = [1, 1]} : vector<2x48xf32> to vector<2x16xf32>
    %27 = vector.extract_strided_slice %22 {offsets = [0, 32], sizes = [2, 16], strides = [1, 1]} : vector<2x48xf32> to vector<2x16xf32>
    %28 = arith.mulf %26, %7 : vector<2x16xf32>
    %29 = arith.mulf %25, %24 : vector<2x16xf32>
    %30 = arith.addf %28, %29 : vector<2x16xf32>
    %31 = math.tanh %30 : vector<2x16xf32>
    %32 = arith.mulf %27, %31 : vector<2x16xf32>
    %33 = vector.broadcast %9 : i32 to vector<2x1xi32>
    %34 = arith.cmpi slt, %33, %1 : vector<2x1xi32>
    %35 = vector.shape_cast %34 : vector<2x1xi1> to vector<2x1xi1>
    %36 = vector.broadcast %35 : vector<2x1xi1> to vector<2x16xi1>
    %37 = arith.select %36, %30, %7 : vector<2x16xi1>, vector<2x16xf32>
    %38 = vector.shape_cast %34 : vector<2x1xi1> to vector<2x1xi1>
    %39 = vector.broadcast %38 : vector<2x1xi1> to vector<2x16xi1>
    %40 = arith.select %39, %32, %6 : vector<2x16xi1>, vector<2x16xf32>
    %cst_13 = arith.constant 0.000000e+00 : f32
    %41 = vector.shape_cast %34 : vector<2x1xi1> to vector<2x1xi1>
    %42 = vector.broadcast %41 : vector<2x1xi1> to vector<2x16xi1>
    %43 = vector.broadcast %cst_13 : f32 to vector<2x16xf32>
    %44 = arith.select %42, %32, %43 : vector<2x16xi1>, vector<2x16xf32>
    %c0_14 = arith.constant 0 : index
    %45 = arith.index_cast %9 : i32 to index
    %c0_15 = arith.constant 0 : index
    %c0_16 = arith.constant 0 : index
    %46 = vector.load %arg5[%c0_14, %45, %c0_15, %c0_16] : memref<1x8x2x16xf32, #tpu.memory_space<vmem>>, vector<1x1x2x16xf32>
    %47 = vector.shape_cast %46 : vector<1x1x2x16xf32> to vector<2x16xf32>
    %48 = vector.shape_cast %44 : vector<2x16xf32> to vector<1x1x2x16xf32>
    tpu.vector_store %arg5[%c0_14, %45, %c0_15, %c0_16], %48 {strides = array<i32>} : memref<1x8x2x16xf32, #tpu.memory_space<vmem>>, vector<1x1x2x16xf32>,
    %c1_i32 = arith.constant 1 : i32
    %c7_i32_17 = arith.constant 7 : i32
    %49 = arith.subi %c7_i32_17, %c1_i32 : i32
    %50 = arith.select %0, %49, %c1_i32 : i32
    %51 = arith.index_cast %50 : i32 to index
    %c0_18 = arith.constant 0 : index
    %c0_19 = arith.constant 0 : index
    %52 = vector.load %arg2[%51, %c0_18, %c0_19] : memref<8x2x32xf32, #tpu.memory_space<vmem>>, vector<1x2x32xf32>
    %53 = vector.shape_cast %52 : vector<1x2x32xf32> to vector<2x32xf32>
    %54 = tpu.concatenate %53, %40 in 1 : vector<2x32xf32>, vector<2x16xf32> -> vector<2x48xf32>
    %cst_20 = arith.constant dense<0.000000e+00> : vector<2x64xf32>
    %55 = tpu.matmul %54, %3, %cst_20 {dimension_numbers = #tpu.dot_dimension_numbers<[1], [0], [0], [1], [0, 0, 1, 1], [], []>} : vector<2x48xf32>, vector<48x64xf32>, vector<2x64xf32> -> vector<2x64xf32>
    %56 = vector.broadcast %5 : vector<1x64xf32> to vector<2x64xf32>
    %57 = arith.addf %55, %56 : vector<2x64xf32>
    %58 = vector.extract_strided_slice %57 {offsets = [0, 0], sizes = [2, 48], strides = [1, 1]} : vector<2x64xf32> to vector<2x48xf32>
    %59 = arith.negf %58 : vector<2x48xf32>
    %60 = math.exp %59 : vector<2x48xf32>
    %cst_21 = arith.constant 1.000000e+00 : f32
    %61 = vector.broadcast %cst_21 : f32 to vector<2x48xf32>
    %62 = arith.addf %61, %60 : vector<2x48xf32>
    %63 = arith.divf %61, %62 : vector<2x48xf32>
    %64 = vector.extract_strided_slice %57 {offsets = [0, 48], sizes = [2, 16], strides = [1, 1]} : vector<2x64xf32> to vector<2x16xf32>
    %65 = math.tanh %64 : vector<2x16xf32>
    %66 = vector.extract_strided_slice %63 {offsets = [0, 0], sizes = [2, 16], strides = [1, 1]} : vector<2x48xf32> to vector<2x16xf32>
    %67 = vector.extract_strided_slice %63 {offsets = [0, 16], sizes = [2, 16], strides = [1, 1]} : vector<2x48xf32> to vector<2x16xf32>
    %68 = vector.extract_strided_slice %63 {offsets = [0, 32], sizes = [2, 16], strides = [1, 1]} : vector<2x48xf32> to vector<2x16xf32>
    %69 = arith.mulf %67, %37 : vector<2x16xf32>
    %70 = arith.mulf %66, %65 : vector<2x16xf32>
    %71 = arith.addf %69, %70 : vector<2x16xf32>
    %72 = math.tanh %71 : vector<2x16xf32>
    %73 = arith.mulf %68, %72 : vector<2x16xf32>
    %74 = vector.broadcast %50 : i32 to vector<2x1xi32>
    %75 = arith.cmpi slt, %74, %1 : vector<2x1xi32>
    %76 = vector.shape_cast %75 : vector<2x1xi1> to vector<2x1xi1>
    %77 = vector.broadcast %76 : vector<2x1xi1> to vector<2x16xi1>
    %78 = arith.select %77, %71, %37 : vector<2x16xi1>, vector<2x16xf32>
    %79 = vector.shape_cast %75 : vector<2x1xi1> to vector<2x1xi1>
    %80 = vector.broadcast %79 : vector<2x1xi1> to vector<2x16xi1>
    %81 = arith.select %80, %73, %40 : vector<2x16xi1>, vector<2x16xf32>
    %cst_22 = arith.constant 0.000000e+00 : f32
    %82 = vector.shape_cast %75 : vector<2x1xi1> to vector<2x1xi1>
    %83 = vector.broadcast %82 : vector<2x1xi1> to vector<2x16xi1>
    %84 = vector.broadcast %cst_22 : f32 to vector<2x16xf32>
    %85 = arith.select %83, %73, %84 : vector<2x16xi1>, vector<2x16xf32>
    %c0_23 = arith.constant 0 : index
    %86 = arith.index_cast %50 : i32 to index
    %c0_24 = arith.constant 0 : index
    %c0_25 = arith.constant 0 : index
    %87 = vector.load %arg5[%c0_23, %86, %c0_24, %c0_25] : memref<1x8x2x16xf32, #tpu.memory_space<vmem>>, vector<1x1x2x16xf32>
    %88 = vector.shape_cast %87 : vector<1x1x2x16xf32> to vector<2x16xf32>
    %89 = vector.shape_cast %85 : vector<2x16xf32> to vector<1x1x2x16xf32>
    tpu.vector_store %arg5[%c0_23, %86, %c0_24, %c0_25], %89 {strides = array<i32>} : memref<1x8x2x16xf32, #tpu.memory_space<vmem>>, vector<1x1x2x16xf32>,
    %c2_i32 = arith.constant 2 : i32
    %c7_i32_26 = arith.constant 7 : i32
    %90 = arith.subi %c7_i32_26, %c2_i32 : i32
    %91 = arith.select %0, %90, %c2_i32 : i32
    %92 = arith.index_cast %91 : i32 to index
    %c0_27 = arith.constant 0 : index
    %c0_28 = arith.constant 0 : index
    %93 = vector.load %arg2[%92, %c0_27, %c0_28] : memref<8x2x32xf32, #tpu.memory_space<vmem>>, vector<1x2x32xf32>
    %94 = vector.shape_cast %93 : vector<1x2x32xf32> to vector<2x32xf32>
    %95 = tpu.concatenate %94, %81 in 1 : vector<2x32xf32>, vector<2x16xf32> -> vector<2x48xf32>
    %cst_29 = arith.constant dense<0.000000e+00> : vector<2x64xf32>
    %96 = tpu.matmul %95, %3, %cst_29 {dimension_numbers = #tpu.dot_dimension_numbers<[1], [0], [0], [1], [0, 0, 1, 1], [], []>} : vector<2x48xf32>, vector<48x64xf32>, vector<2x64xf32> -> vector<2x64xf32>
    %97 = vector.broadcast %5 : vector<1x64xf32> to vector<2x64xf32>
    %98 = arith.addf %96, %97 : vector<2x64xf32>
    %99 = vector.extract_strided_slice %98 {offsets = [0, 0], sizes = [2, 48], strides = [1, 1]} : vector<2x64xf32> to vector<2x48xf32>
    %100 = arith.negf %99 : vector<2x48xf32>
    %101 = math.exp %100 : vector<2x48xf32>
    %cst_30 = arith.constant 1.000000e+00 : f32
    %102 = vector.broadcast %cst_30 : f32 to vector<2x48xf32>
    %103 = arith.addf %102, %101 : vector<2x48xf32>
    %104 = arith.divf %102, %103 : vector<2x48xf32>
    %105 = vector.extract_strided_slice %98 {offsets = [0, 48], sizes = [2, 16], strides = [1, 1]} : vector<2x64xf32> to vector<2x16xf32>
    %106 = math.tanh %105 : vector<2x16xf32>
    %107 = vector.extract_strided_slice %104 {offsets = [0, 0], sizes = [2, 16], strides = [1, 1]} : vector<2x48xf32> to vector<2x16xf32>
    %108 = vector.extract_strided_slice %104 {offsets = [0, 16], sizes = [2, 16], strides = [1, 1]} : vector<2x48xf32> to vector<2x16xf32>
    %109 = vector.extract_strided_slice %104 {offsets = [0, 32], sizes = [2, 16], strides = [1, 1]} : vector<2x48xf32> to vector<2x16xf32>
    %110 = arith.mulf %108, %78 : vector<2x16xf32>
    %111 = arith.mulf %107, %106 : vector<2x16xf32>
    %112 = arith.addf %110, %111 : vector<2x16xf32>
    %113 = math.tanh %112 : vector<2x16xf32>
    %114 = arith.mulf %109, %113 : vector<2x16xf32>
    %115 = vector.broadcast %91 : i32 to vector<2x1xi32>
    %116 = arith.cmpi slt, %115, %1 : vector<2x1xi32>
    %117 = vector.shape_cast %116 : vector<2x1xi1> to vector<2x1xi1>
    %118 = vector.broadcast %117 : vector<2x1xi1> to vector<2x16xi1>
    %119 = arith.select %118, %112, %78 : vector<2x16xi1>, vector<2x16xf32>
    %120 = vector.shape_cast %116 : vector<2x1xi1> to vector<2x1xi1>
    %121 = vector.broadcast %120 : vector<2x1xi1> to vector<2x16xi1>
    %122 = arith.select %121, %114, %81 : vector<2x16xi1>, vector<2x16xf32>
    %cst_31 = arith.constant 0.000000e+00 : f32
    %123 = vector.shape_cast %116 : vector<2x1xi1> to vector<2x1xi1>
    %124 = vector.broadcast %123 : vector<2x1xi1> to vector<2x16xi1>
    %125 = vector.broadcast %cst_31 : f32 to vector<2x16xf32>
    %126 = arith.select %124, %114, %125 : vector<2x16xi1>, vector<2x16xf32>
    %c0_32 = arith.constant 0 : index
    %127 = arith.index_cast %91 : i32 to index
    %c0_33 = arith.constant 0 : index
    %c0_34 = arith.constant 0 : index
    %128 = vector.load %arg5[%c0_32, %127, %c0_33, %c0_34] : memref<1x8x2x16xf32, #tpu.memory_space<vmem>>, vector<1x1x2x16xf32>
    %129 = vector.shape_cast %128 : vector<1x1x2x16xf32> to vector<2x16xf32>
    %130 = vector.shape_cast %126 : vector<2x16xf32> to vector<1x1x2x16xf32>
    tpu.vector_store %arg5[%c0_32, %127, %c0_33, %c0_34], %130 {strides = array<i32>} : memref<1x8x2x16xf32, #tpu.memory_space<vmem>>, vector<1x1x2x16xf32>,
    %c3_i32 = arith.constant 3 : i32
    %c7_i32_35 = arith.constant 7 : i32
    %131 = arith.subi %c7_i32_35, %c3_i32 : i32
    %132 = arith.select %0, %131, %c3_i32 : i32
    %133 = arith.index_cast %132 : i32 to index
    %c0_36 = arith.constant 0 : index
    %c0_37 = arith.constant 0 : index
    %134 = vector.load %arg2[%133, %c0_36, %c0_37] : memref<8x2x32xf32, #tpu.memory_space<vmem>>, vector<1x2x32xf32>
    %135 = vector.shape_cast %134 : vector<1x2x32xf32> to vector<2x32xf32>
    %136 = tpu.concatenate %135, %122 in 1 : vector<2x32xf32>, vector<2x16xf32> -> vector<2x48xf32>
    %cst_38 = arith.constant dense<0.000000e+00> : vector<2x64xf32>
    %137 = tpu.matmul %136, %3, %cst_38 {dimension_numbers = #tpu.dot_dimension_numbers<[1], [0], [0], [1], [0, 0, 1, 1], [], []>} : vector<2x48xf32>, vector<48x64xf32>, vector<2x64xf32> -> vector<2x64xf32>
    %138 = vector.broadcast %5 : vector<1x64xf32> to vector<2x64xf32>
    %139 = arith.addf %137, %138 : vector<2x64xf32>
    %140 = vector.extract_strided_slice %139 {offsets = [0, 0], sizes = [2, 48], strides = [1, 1]} : vector<2x64xf32> to vector<2x48xf32>
    %141 = arith.negf %140 : vector<2x48xf32>
    %142 = math.exp %141 : vector<2x48xf32>
    %cst_39 = arith.constant 1.000000e+00 : f32
    %143 = vector.broadcast %cst_39 : f32 to vector<2x48xf32>
    %144 = arith.addf %143, %142 : vector<2x48xf32>
    %145 = arith.divf %143, %144 : vector<2x48xf32>
    %146 = vector.extract_strided_slice %139 {offsets = [0, 48], sizes = [2, 16], strides = [1, 1]} : vector<2x64xf32> to vector<2x16xf32>
    %147 = math.tanh %146 : vector<2x16xf32>
    %148 = vector.extract_strided_slice %145 {offsets = [0, 0], sizes = [2, 16], strides = [1, 1]} : vector<2x48xf32> to vector<2x16xf32>
    %149 = vector.extract_strided_slice %145 {offsets = [0, 16], sizes = [2, 16], strides = [1, 1]} : vector<2x48xf32> to vector<2x16xf32>
    %150 = vector.extract_strided_slice %145 {offsets = [0, 32], sizes = [2, 16], strides = [1, 1]} : vector<2x48xf32> to vector<2x16xf32>
    %151 = arith.mulf %149, %119 : vector<2x16xf32>
    %152 = arith.mulf %148, %147 : vector<2x16xf32>
    %153 = arith.addf %151, %152 : vector<2x16xf32>
    %154 = math.tanh %153 : vector<2x16xf32>
    %155 = arith.mulf %150, %154 : vector<2x16xf32>
    %156 = vector.broadcast %132 : i32 to vector<2x1xi32>
    %157 = arith.cmpi slt, %156, %1 : vector<2x1xi32>
    %158 = vector.shape_cast %157 : vector<2x1xi1> to vector<2x1xi1>
    %159 = vector.broadcast %158 : vector<2x1xi1> to vector<2x16xi1>
    %160 = arith.select %159, %153, %119 : vector<2x16xi1>, vector<2x16xf32>
    %161 = vector.shape_cast %157 : vector<2x1xi1> to vector<2x1xi1>
    %162 = vector.broadcast %161 : vector<2x1xi1> to vector<2x16xi1>
    %163 = arith.select %162, %155, %122 : vector<2x16xi1>, vector<2x16xf32>
    %cst_40 = arith.constant 0.000000e+00 : f32
    %164 = vector.shape_cast %157 : vector<2x1xi1> to vector<2x1xi1>
    %165 = vector.broadcast %164 : vector<2x1xi1> to vector<2x16xi1>
    %166 = vector.broadcast %cst_40 : f32 to vector<2x16xf32>
    %167 = arith.select %165, %155, %166 : vector<2x16xi1>, vector<2x16xf32>
    %c0_41 = arith.constant 0 : index
    %168 = arith.index_cast %132 : i32 to index
    %c0_42 = arith.constant 0 : index
    %c0_43 = arith.constant 0 : index
    %169 = vector.load %arg5[%c0_41, %168, %c0_42, %c0_43] : memref<1x8x2x16xf32, #tpu.memory_space<vmem>>, vector<1x1x2x16xf32>
    %170 = vector.shape_cast %169 : vector<1x1x2x16xf32> to vector<2x16xf32>
    %171 = vector.shape_cast %167 : vector<2x16xf32> to vector<1x1x2x16xf32>
    tpu.vector_store %arg5[%c0_41, %168, %c0_42, %c0_43], %171 {strides = array<i32>} : memref<1x8x2x16xf32, #tpu.memory_space<vmem>>, vector<1x1x2x16xf32>,
    %c4_i32 = arith.constant 4 : i32
    %c7_i32_44 = arith.constant 7 : i32
    %172 = arith.subi %c7_i32_44, %c4_i32 : i32
    %173 = arith.select %0, %172, %c4_i32 : i32
    %174 = arith.index_cast %173 : i32 to index
    %c0_45 = arith.constant 0 : index
    %c0_46 = arith.constant 0 : index
    %175 = vector.load %arg2[%174, %c0_45, %c0_46] : memref<8x2x32xf32, #tpu.memory_space<vmem>>, vector<1x2x32xf32>
    %176 = vector.shape_cast %175 : vector<1x2x32xf32> to vector<2x32xf32>
    %177 = tpu.concatenate %176, %163 in 1 : vector<2x32xf32>, vector<2x16xf32> -> vector<2x48xf32>
    %cst_47 = arith.constant dense<0.000000e+00> : vector<2x64xf32>
    %178 = tpu.matmul %177, %3, %cst_47 {dimension_numbers = #tpu.dot_dimension_numbers<[1], [0], [0], [1], [0, 0, 1, 1], [], []>} : vector<2x48xf32>, vector<48x64xf32>, vector<2x64xf32> -> vector<2x64xf32>
    %179 = vector.broadcast %5 : vector<1x64xf32> to vector<2x64xf32>
    %180 = arith.addf %178, %179 : vector<2x64xf32>
    %181 = vector.extract_strided_slice %180 {offsets = [0, 0], sizes = [2, 48], strides = [1, 1]} : vector<2x64xf32> to vector<2x48xf32>
    %182 = arith.negf %181 : vector<2x48xf32>
    %183 = math.exp %182 : vector<2x48xf32>
    %cst_48 = arith.constant 1.000000e+00 : f32
    %184 = vector.broadcast %cst_48 : f32 to vector<2x48xf32>
    %185 = arith.addf %184, %183 : vector<2x48xf32>
    %186 = arith.divf %184, %185 : vector<2x48xf32>
    %187 = vector.extract_strided_slice %180 {offsets = [0, 48], sizes = [2, 16], strides = [1, 1]} : vector<2x64xf32> to vector<2x16xf32>
    %188 = math.tanh %187 : vector<2x16xf32>
    %189 = vector.extract_strided_slice %186 {offsets = [0, 0], sizes = [2, 16], strides = [1, 1]} : vector<2x48xf32> to vector<2x16xf32>
    %190 = vector.extract_strided_slice %186 {offsets = [0, 16], sizes = [2, 16], strides = [1, 1]} : vector<2x48xf32> to vector<2x16xf32>
    %191 = vector.extract_strided_slice %186 {offsets = [0, 32], sizes = [2, 16], strides = [1, 1]} : vector<2x48xf32> to vector<2x16xf32>
    %192 = arith.mulf %190, %160 : vector<2x16xf32>
    %193 = arith.mulf %189, %188 : vector<2x16xf32>
    %194 = arith.addf %192, %193 : vector<2x16xf32>
    %195 = math.tanh %194 : vector<2x16xf32>
    %196 = arith.mulf %191, %195 : vector<2x16xf32>
    %197 = vector.broadcast %173 : i32 to vector<2x1xi32>
    %198 = arith.cmpi slt, %197, %1 : vector<2x1xi32>
    %199 = vector.shape_cast %198 : vector<2x1xi1> to vector<2x1xi1>
    %200 = vector.broadcast %199 : vector<2x1xi1> to vector<2x16xi1>
    %201 = arith.select %200, %194, %160 : vector<2x16xi1>, vector<2x16xf32>
    %202 = vector.shape_cast %198 : vector<2x1xi1> to vector<2x1xi1>
    %203 = vector.broadcast %202 : vector<2x1xi1> to vector<2x16xi1>
    %204 = arith.select %203, %196, %163 : vector<2x16xi1>, vector<2x16xf32>
    %cst_49 = arith.constant 0.000000e+00 : f32
    %205 = vector.shape_cast %198 : vector<2x1xi1> to vector<2x1xi1>
    %206 = vector.broadcast %205 : vector<2x1xi1> to vector<2x16xi1>
    %207 = vector.broadcast %cst_49 : f32 to vector<2x16xf32>
    %208 = arith.select %206, %196, %207 : vector<2x16xi1>, vector<2x16xf32>
    %c0_50 = arith.constant 0 : index
    %209 = arith.index_cast %173 : i32 to index
    %c0_51 = arith.constant 0 : index
    %c0_52 = arith.constant 0 : index
    %210 = vector.load %arg5[%c0_50, %209, %c0_51, %c0_52] : memref<1x8x2x16xf32, #tpu.memory_space<vmem>>, vector<1x1x2x16xf32>
    %211 = vector.shape_cast %210 : vector<1x1x2x16xf32> to vector<2x16xf32>
    %212 = vector.shape_cast %208 : vector<2x16xf32> to vector<1x1x2x16xf32>
    tpu.vector_store %arg5[%c0_50, %209, %c0_51, %c0_52], %212 {strides = array<i32>} : memref<1x8x2x16xf32, #tpu.memory_space<vmem>>, vector<1x1x2x16xf32>,
    %c5_i32 = arith.constant 5 : i32
    %c7_i32_53 = arith.constant 7 : i32
    %213 = arith.subi %c7_i32_53, %c5_i32 : i32
    %214 = arith.select %0, %213, %c5_i32 : i32
    %215 = arith.index_cast %214 : i32 to index
    %c0_54 = arith.constant 0 : index
    %c0_55 = arith.constant 0 : index
    %216 = vector.load %arg2[%215, %c0_54, %c0_55] : memref<8x2x32xf32, #tpu.memory_space<vmem>>, vector<1x2x32xf32>
    %217 = vector.shape_cast %216 : vector<1x2x32xf32> to vector<2x32xf32>
    %218 = tpu.concatenate %217, %204 in 1 : vector<2x32xf32>, vector<2x16xf32> -> vector<2x48xf32>
    %cst_56 = arith.constant dense<0.000000e+00> : vector<2x64xf32>
    %219 = tpu.matmul %218, %3, %cst_56 {dimension_numbers = #tpu.dot_dimension_numbers<[1], [0], [0], [1], [0, 0, 1, 1], [], []>} : vector<2x48xf32>, vector<48x64xf32>, vector<2x64xf32> -> vector<2x64xf32>
    %220 = vector.broadcast %5 : vector<1x64xf32> to vector<2x64xf32>
    %221 = arith.addf %219, %220 : vector<2x64xf32>
    %222 = vector.extract_strided_slice %221 {offsets = [0, 0], sizes = [2, 48], strides = [1, 1]} : vector<2x64xf32> to vector<2x48xf32>
    %223 = arith.negf %222 : vector<2x48xf32>
    %224 = math.exp %223 : vector<2x48xf32>
    %cst_57 = arith.constant 1.000000e+00 : f32
    %225 = vector.broadcast %cst_57 : f32 to vector<2x48xf32>
    %226 = arith.addf %225, %224 : vector<2x48xf32>
    %227 = arith.divf %225, %226 : vector<2x48xf32>
    %228 = vector.extract_strided_slice %221 {offsets = [0, 48], sizes = [2, 16], strides = [1, 1]} : vector<2x64xf32> to vector<2x16xf32>
    %229 = math.tanh %228 : vector<2x16xf32>
    %230 = vector.extract_strided_slice %227 {offsets = [0, 0], sizes = [2, 16], strides = [1, 1]} : vector<2x48xf32> to vector<2x16xf32>
    %231 = vector.extract_strided_slice %227 {offsets = [0, 16], sizes = [2, 16], strides = [1, 1]} : vector<2x48xf32> to vector<2x16xf32>
    %232 = vector.extract_strided_slice %227 {offsets = [0, 32], sizes = [2, 16], strides = [1, 1]} : vector<2x48xf32> to vector<2x16xf32>
    %233 = arith.mulf %231, %201 : vector<2x16xf32>
    %234 = arith.mulf %230, %229 : vector<2x16xf32>
    %235 = arith.addf %233, %234 : vector<2x16xf32>
    %236 = math.tanh %235 : vector<2x16xf32>
    %237 = arith.mulf %232, %236 : vector<2x16xf32>
    %238 = vector.broadcast %214 : i32 to vector<2x1xi32>
    %239 = arith.cmpi slt, %238, %1 : vector<2x1xi32>
    %240 = vector.shape_cast %239 : vector<2x1xi1> to vector<2x1xi1>
    %241 = vector.broadcast %240 : vector<2x1xi1> to vector<2x16xi1>
    %242 = arith.select %241, %235, %201 : vector<2x16xi1>, vector<2x16xf32>
    %243 = vector.shape_cast %239 : vector<2x1xi1> to vector<2x1xi1>
    %244 = vector.broadcast %243 : vector<2x1xi1> to vector<2x16xi1>
    %245 = arith.select %244, %237, %204 : vector<2x16xi1>, vector<2x16xf32>
    %cst_58 = arith.constant 0.000000e+00 : f32
    %246 = vector.shape_cast %239 : vector<2x1xi1> to vector<2x1xi1>
    %247 = vector.broadcast %246 : vector<2x1xi1> to vector<2x16xi1>
    %248 = vector.broadcast %cst_58 : f32 to vector<2x16xf32>
    %249 = arith.select %247, %237, %248 : vector<2x16xi1>, vector<2x16xf32>
    %c0_59 = arith.constant 0 : index
    %250 = arith.index_cast %214 : i32 to index
    %c0_60 = arith.constant 0 : index
    %c0_61 = arith.constant 0 : index
    %251 = vector.load %arg5[%c0_59, %250, %c0_60, %c0_61] : memref<1x8x2x16xf32, #tpu.memory_space<vmem>>, vector<1x1x2x16xf32>
    %252 = vector.shape_cast %251 : vector<1x1x2x16xf32> to vector<2x16xf32>
    %253 = vector.shape_cast %249 : vector<2x16xf32> to vector<1x1x2x16xf32>
    tpu.vector_store %arg5[%c0_59, %250, %c0_60, %c0_61], %253 {strides = array<i32>} : memref<1x8x2x16xf32, #tpu.memory_space<vmem>>, vector<1x1x2x16xf32>,
    %c6_i32 = arith.constant 6 : i32
    %c7_i32_62 = arith.constant 7 : i32
    %254 = arith.subi %c7_i32_62, %c6_i32 : i32
    %255 = arith.select %0, %254, %c6_i32 : i32
    %256 = arith.index_cast %255 : i32 to index
    %c0_63 = arith.constant 0 : index
    %c0_64 = arith.constant 0 : index
    %257 = vector.load %arg2[%256, %c0_63, %c0_64] : memref<8x2x32xf32, #tpu.memory_space<vmem>>, vector<1x2x32xf32>
    %258 = vector.shape_cast %257 : vector<1x2x32xf32> to vector<2x32xf32>
    %259 = tpu.concatenate %258, %245 in 1 : vector<2x32xf32>, vector<2x16xf32> -> vector<2x48xf32>
    %cst_65 = arith.constant dense<0.000000e+00> : vector<2x64xf32>
    %260 = tpu.matmul %259, %3, %cst_65 {dimension_numbers = #tpu.dot_dimension_numbers<[1], [0], [0], [1], [0, 0, 1, 1], [], []>} : vector<2x48xf32>, vector<48x64xf32>, vector<2x64xf32> -> vector<2x64xf32>
    %261 = vector.broadcast %5 : vector<1x64xf32> to vector<2x64xf32>
    %262 = arith.addf %260, %261 : vector<2x64xf32>
    %263 = vector.extract_strided_slice %262 {offsets = [0, 0], sizes = [2, 48], strides = [1, 1]} : vector<2x64xf32> to vector<2x48xf32>
    %264 = arith.negf %263 : vector<2x48xf32>
    %265 = math.exp %264 : vector<2x48xf32>
    %cst_66 = arith.constant 1.000000e+00 : f32
    %266 = vector.broadcast %cst_66 : f32 to vector<2x48xf32>
    %267 = arith.addf %266, %265 : vector<2x48xf32>
    %268 = arith.divf %266, %267 : vector<2x48xf32>
    %269 = vector.extract_strided_slice %262 {offsets = [0, 48], sizes = [2, 16], strides = [1, 1]} : vector<2x64xf32> to vector<2x16xf32>
    %270 = math.tanh %269 : vector<2x16xf32>
    %271 = vector.extract_strided_slice %268 {offsets = [0, 0], sizes = [2, 16], strides = [1, 1]} : vector<2x48xf32> to vector<2x16xf32>
    %272 = vector.extract_strided_slice %268 {offsets = [0, 16], sizes = [2, 16], strides = [1, 1]} : vector<2x48xf32> to vector<2x16xf32>
    %273 = vector.extract_strided_slice %268 {offsets = [0, 32], sizes = [2, 16], strides = [1, 1]} : vector<2x48xf32> to vector<2x16xf32>
    %274 = arith.mulf %272, %242 : vector<2x16xf32>
    %275 = arith.mulf %271, %270 : vector<2x16xf32>
    %276 = arith.addf %274, %275 : vector<2x16xf32>
    %277 = math.tanh %276 : vector<2x16xf32>
    %278 = arith.mulf %273, %277 : vector<2x16xf32>
    %279 = vector.broadcast %255 : i32 to vector<2x1xi32>
    %280 = arith.cmpi slt, %279, %1 : vector<2x1xi32>
    %281 = vector.shape_cast %280 : vector<2x1xi1> to vector<2x1xi1>
    %282 = vector.broadcast %281 : vector<2x1xi1> to vector<2x16xi1>
    %283 = arith.select %282, %276, %242 : vector<2x16xi1>, vector<2x16xf32>
    %284 = vector.shape_cast %280 : vector<2x1xi1> to vector<2x1xi1>
    %285 = vector.broadcast %284 : vector<2x1xi1> to vector<2x16xi1>
    %286 = arith.select %285, %278, %245 : vector<2x16xi1>, vector<2x16xf32>
    %cst_67 = arith.constant 0.000000e+00 : f32
    %287 = vector.shape_cast %280 : vector<2x1xi1> to vector<2x1xi1>
    %288 = vector.broadcast %287 : vector<2x1xi1> to vector<2x16xi1>
    %289 = vector.broadcast %cst_67 : f32 to vector<2x16xf32>
    %290 = arith.select %288, %278, %289 : vector<2x16xi1>, vector<2x16xf32>
    %c0_68 = arith.constant 0 : index
    %291 = arith.index_cast %255 : i32 to index
    %c0_69 = arith.constant 0 : index
    %c0_70 = arith.constant 0 : index
    %292 = vector.load %arg5[%c0_68, %291, %c0_69, %c0_70] : memref<1x8x2x16xf32, #tpu.memory_space<vmem>>, vector<1x1x2x16xf32>
    %293 = vector.shape_cast %292 : vector<1x1x2x16xf32> to vector<2x16xf32>
    %294 = vector.shape_cast %290 : vector<2x16xf32> to vector<1x1x2x16xf32>
    tpu.vector_store %arg5[%c0_68, %291, %c0_69, %c0_70], %294 {strides = array<i32>} : memref<1x8x2x16xf32, #tpu.memory_space<vmem>>, vector<1x1x2x16xf32>,
    %c7_i32_71 = arith.constant 7 : i32
    %c7_i32_72 = arith.constant 7 : i32
    %295 = arith.subi %c7_i32_72, %c7_i32_71 : i32
    %296 = arith.select %0, %295, %c7_i32_71 : i32
    %297 = arith.index_cast %296 : i32 to index
    %c0_73 = arith.constant 0 : index
    %c0_74 = arith.constant 0 : index
    %298 = vector.load %arg2[%297, %c0_73, %c0_74] : memref<8x2x32xf32, #tpu.memory_space<vmem>>, vector<1x2x32xf32>
    %299 = vector.shape_cast %298 : vector<1x2x32xf32> to vector<2x32xf32>
    %300 = tpu.concatenate %299, %286 in 1 : vector<2x32xf32>, vector<2x16xf32> -> vector<2x48xf32>
    %cst_75 = arith.constant dense<0.000000e+00> : vector<2x64xf32>
    %301 = tpu.matmul %300, %3, %cst_75 {dimension_numbers = #tpu.dot_dimension_numbers<[1], [0], [0], [1], [0, 0, 1, 1], [], []>} : vector<2x48xf32>, vector<48x64xf32>, vector<2x64xf32> -> vector<2x64xf32>
    %302 = vector.broadcast %5 : vector<1x64xf32> to vector<2x64xf32>
    %303 = arith.addf %301, %302 : vector<2x64xf32>
    %304 = vector.extract_strided_slice %303 {offsets = [0, 0], sizes = [2, 48], strides = [1, 1]} : vector<2x64xf32> to vector<2x48xf32>
    %305 = arith.negf %304 : vector<2x48xf32>
    %306 = math.exp %305 : vector<2x48xf32>
    %cst_76 = arith.constant 1.000000e+00 : f32
    %307 = vector.broadcast %cst_76 : f32 to vector<2x48xf32>
    %308 = arith.addf %307, %306 : vector<2x48xf32>
    %309 = arith.divf %307, %308 : vector<2x48xf32>
    %310 = vector.extract_strided_slice %303 {offsets = [0, 48], sizes = [2, 16], strides = [1, 1]} : vector<2x64xf32> to vector<2x16xf32>
    %311 = math.tanh %310 : vector<2x16xf32>
    %312 = vector.extract_strided_slice %309 {offsets = [0, 0], sizes = [2, 16], strides = [1, 1]} : vector<2x48xf32> to vector<2x16xf32>
    %313 = vector.extract_strided_slice %309 {offsets = [0, 16], sizes = [2, 16], strides = [1, 1]} : vector<2x48xf32> to vector<2x16xf32>
    %314 = vector.extract_strided_slice %309 {offsets = [0, 32], sizes = [2, 16], strides = [1, 1]} : vector<2x48xf32> to vector<2x16xf32>
    %315 = arith.mulf %313, %283 : vector<2x16xf32>
    %316 = arith.mulf %312, %311 : vector<2x16xf32>
    %317 = arith.addf %315, %316 : vector<2x16xf32>
    %318 = math.tanh %317 : vector<2x16xf32>
    %319 = arith.mulf %314, %318 : vector<2x16xf32>
    %320 = vector.broadcast %296 : i32 to vector<2x1xi32>
    %321 = arith.cmpi slt, %320, %1 : vector<2x1xi32>
    %322 = vector.shape_cast %321 : vector<2x1xi1> to vector<2x1xi1>
    %323 = vector.broadcast %322 : vector<2x1xi1> to vector<2x16xi1>
    %324 = arith.select %323, %317, %283 : vector<2x16xi1>, vector<2x16xf32>
    %325 = vector.shape_cast %321 : vector<2x1xi1> to vector<2x1xi1>
    %326 = vector.broadcast %325 : vector<2x1xi1> to vector<2x16xi1>
    %327 = arith.select %326, %319, %286 : vector<2x16xi1>, vector<2x16xf32>
    %cst_77 = arith.constant 0.000000e+00 : f32
    %328 = vector.shape_cast %321 : vector<2x1xi1> to vector<2x1xi1>
    %329 = vector.broadcast %328 : vector<2x1xi1> to vector<2x16xi1>
    %330 = vector.broadcast %cst_77 : f32 to vector<2x16xf32>
    %331 = arith.select %329, %319, %330 : vector<2x16xi1>, vector<2x16xf32>
    %c0_78 = arith.constant 0 : index
    %332 = arith.index_cast %296 : i32 to index
    %c0_79 = arith.constant 0 : index
    %c0_80 = arith.constant 0 : index
    %333 = vector.load %arg5[%c0_78, %332, %c0_79, %c0_80] : memref<1x8x2x16xf32, #tpu.memory_space<vmem>>, vector<1x1x2x16xf32>
    %334 = vector.shape_cast %333 : vector<1x1x2x16xf32> to vector<2x16xf32>
    %335 = vector.shape_cast %331 : vector<2x16xf32> to vector<1x1x2x16xf32>
    tpu.vector_store %arg5[%c0_78, %332, %c0_79, %c0_80], %335 {strides = array<i32>} : memref<1x8x2x16xf32, #tpu.memory_space<vmem>>, vector<1x1x2x16xf32>,
    %c8_i32 = arith.constant 8 : i32
    %c0_81 = arith.constant 0 : index
    %c0_82 = arith.constant 0 : index
    %c0_83 = arith.constant 0 : index
    %336 = vector.load %arg6[%c0_81, %c0_82, %c0_83] : memref<1x2x16xf32, #tpu.memory_space<vmem>>, vector<1x2x16xf32>
    %337 = vector.shape_cast %336 : vector<1x2x16xf32> to vector<2x16xf32>
    %338 = vector.shape_cast %327 : vector<2x16xf32> to vector<1x2x16xf32>
    tpu.vector_store %arg6[%c0_81, %c0_82, %c0_83], %338 {strides = array<i32>} : memref<1x2x16xf32, #tpu.memory_space<vmem>>, vector<1x2x16xf32>,
    %c0_84 = arith.constant 0 : index
    %c0_85 = arith.constant 0 : index
    %c0_86 = arith.constant 0 : index
    %339 = vector.load %arg7[%c0_84, %c0_85, %c0_86] : memref<1x2x16xf32, #tpu.memory_space<vmem>>, vector<1x2x16xf32>
    %340 = vector.shape_cast %339 : vector<1x2x16xf32> to vector<2x16xf32>
    %341 = vector.shape_cast %324 : vector<2x16xf32> to vector<1x2x16xf32>
    tpu.vector_store %arg7[%c0_84, %c0_85, %c0_86], %341 {strides = array<i32>} : memref<1x2x16xf32, #tpu.memory_space<vmem>>, vector<1x2x16xf32>,
    return
  }
  func.func @transform_0(%arg0: i32) -> (i32, i32) {
    %c0_i32 = arith.constant 0 : i32
    %c0_i32_0 = arith.constant 0 : i32
    %c0_i32_1 = arith.constant 0 : i32
    return %c0_i32, %c0_i32_0 : i32, i32
  }
  func.func @transform_1(%arg0: i32) -> (i32, i32, i32) {
    %c0_i32 = arith.constant 0 : i32
    %c0_i32_0 = arith.constant 0 : i32
    %c0_i32_1 = arith.constant 0 : i32
    %c0_i32_2 = arith.constant 0 : i32
    return %c0_i32, %c0_i32_0, %c0_i32_1 : i32, i32, i32
  }
  func.func @transform_2(%arg0: i32) -> (i32, i32, i32) {
    %c0_i32 = arith.constant 0 : i32
    %c0_i32_0 = arith.constant 0 : i32
    %c0_i32_1 = arith.constant 0 : i32
    return %arg0, %c0_i32, %c0_i32_0 : i32, i32, i32
  }
  func.func @transform_3(%arg0: i32) -> (i32, i32, i32) {
    %c0_i32 = arith.constant 0 : i32
    %c0_i32_0 = arith.constant 0 : i32
    %c0_i32_1 = arith.constant 0 : i32
    return %arg0, %c0_i32, %c0_i32_0 : i32, i32, i32
  }
  func.func @transform_4(%arg0: i32) -> (i32, i32, i32, i32) {
    %c0_i32 = arith.constant 0 : i32
    %c0_i32_0 = arith.constant 0 : i32
    %c0_i32_1 = arith.constant 0 : i32
    %c0_i32_2 = arith.constant 0 : i32
    return %arg0, %c0_i32, %c0_i32_0, %c0_i32_1 : i32, i32, i32, i32
  }
  func.func @transform_5(%arg0: i32) -> (i32, i32, i32) {
    %c0_i32 = arith.constant 0 : i32
    %c0_i32_0 = arith.constant 0 : i32
    %c0_i32_1 = arith.constant 0 : i32
    return %arg0, %c0_i32, %c0_i32_0 : i32, i32, i32
  }
  func.func @transform_6(%arg0: i32) -> (i32, i32, i32) {
    %c0_i32 = arith.constant 0 : i32
    %c0_i32_0 = arith.constant 0 : i32
    %c0_i32_1 = arith.constant 0 : i32
    return %arg0, %c0_i32, %c0_i32_0 : i32, i32, i32
  }
}

</mosaic_0001>

<llo_original>
// kernel: encoder_forward.2
$region0: #{encoder_forward.2}
  #allocation0 [shape = 'u32[]', space=smem, size = 0x4, offset = 0x4, fixed_abs, tag = 'smem constant byte address 0x4 - core index']
  #allocation1 [shape = 'u32[144,128]{1,0:T(1,128)}', space=vmem, size = 0x12000, scoped, tag = 'internal scratch']
  %s0 = inlined_call_operand.vmem [shape: s32[2,1], index: 0, kind: input, shape index: {}]
  %s1 = inlined_call_operand.vmem [shape: f32[8,2,32], index: 1, kind: input, shape index: {}]
  %s2 = inlined_call_operand.vmem [shape: f32[2,48,64], index: 2, kind: input, shape index: {}]
  %s3 = inlined_call_operand.vmem [shape: f32[2,1,64], index: 3, kind: input, shape index: {}]
  %s4 = inlined_call_operand.vmem [shape: f32[2,8,2,16], index: 4, kind: output, shape index: {0}]
  %s5 = inlined_call_operand.vmem [shape: f32[2,2,16], index: 5, kind: output, shape index: {1}]
  %s6 = inlined_call_operand.vmem [shape: f32[2,2,16], index: 6, kind: output, shape index: {2}]
  %7 = xla_tuple %s4, %s5, %s6
  %s8 = sld [smem:[#allocation0]]
  $region65: #{encoder_forward.2} parent=0
    _
  %s10 = ssub.s32 1, %s8
  %s11 = scalar_select 0, %s10, %s8
  loop: start=0, step=1, limit=4
  $region2: #{encoder_forward.2} parent=0 // loop_pre_header
    _
  $region3: #{encoder_forward.2} parent=0 // loop_header
    %s13 = sphi 0, %s17
    %p14 = scmp.ge.s32.totalorder %s13, 4
    %s21 = sphi 0, %s21
    %s23 = sphi 0, %s21
    %s24 = sphi 0, %s23
    %s38 = sphi 0, %s24
    %s42 = sphi 0, %s42
    %s44 = sphi 0, %s42
    %s45 = sphi 0, %s44
    %s59 = sphi 0, %s45
    %s65 = sphi 0, %s67
    %s68 = sphi 0, %s65
    %s69 = sphi 0, %s68
    %s85 = sphi 0, %s69
    %s91 = sphi 0, %s93
    %s94 = sphi 0, %s91
    %s95 = sphi 0, %s94
    %s111 = sphi 0, %s95
    %s117 = sphi 0, %s119
    %s120 = sphi 0, %s117
    %s121 = sphi 0, %s120
    %s137 = sphi 0, %s121
    %s143 = sphi 0, %s145
    %s146 = sphi 0, %s143
    %s147 = sphi 0, %s146
    %s163 = sphi 0, %s147
    %s169 = sphi 0, %s171
    %s172 = sphi 0, %s169
    %s173 = sphi 0, %s172
    %s189 = sphi 0, %s173
  $region4: #{encoder_forward.2} parent=0 // loop_header_branch
    %16 = sbr.rel (%p14) target = $region8
  $region5: #{encoder_forward.2} parent=0 // loop_body
    %s18 = ssub.s32 %s13, 1
    %s19 = ssub.s32 %s13, 2
    %s20 = sadd.s32 %s13, 1
    %s22 = sadd.s32 %s21, 1
    %p25 = scmp.eq.s32.totalorder %s13, 1
    %p26 = scmp.ne.s32.totalorder %s21, %s23
    %p27 = scmp.eq.s32.totalorder %s13, 0
    %p28 = por %p26, %p27
    %p29 = scmp.ne.s32.totalorder %s21, %s23
    %p30 = scmp.eq.s32.totalorder %s18, 1
    %p31 = por %p29, %p30
    %p32 = scmp.ne.s32.totalorder %s23, %s24
    %p33 = scmp.eq.s32.totalorder %s18, 0
    %p34 = por %p32, %p33
    %p35 = scmp.ne.s32.totalorder %s23, %s24
    %p36 = scmp.eq.s32.totalorder %s19, 1
    %p37 = por %p35, %p36
    %p39 = scmp.ne.s32.totalorder %s24, %s38
    %p40 = scmp.eq.s32.totalorder %s19, 0
    %p41 = por %p39, %p40
    %s43 = sadd.s32 %s42, 1
    %p46 = scmp.eq.s32.totalorder %s13, 1
    %p47 = scmp.ne.s32.totalorder %s42, %s44
    %p48 = scmp.eq.s32.totalorder %s13, 0
    %p49 = por %p47, %p48
    %p50 = scmp.ne.s32.totalorder %s42, %s44
    %p51 = scmp.eq.s32.totalorder %s18, 1
    %p52 = por %p50, %p51
    %p53 = scmp.ne.s32.totalorder %s44, %s45
    %p54 = scmp.eq.s32.totalorder %s18, 0
    %p55 = por %p53, %p54
    %p56 = scmp.ne.s32.totalorder %s44, %s45
    %p57 = scmp.eq.s32.totalorder %s19, 1
    %p58 = por %p56, %p57
    %p60 = scmp.ne.s32.totalorder %s45, %s59
    %p61 = scmp.eq.s32.totalorder %s19, 0
    %p62 = por %p60, %p61
    %s63 = ssub.s32 %s13, %s20
    %p64 = scmp.eq.s32.totalorder %s63, 0
    %s66 = sadd.s32 %s65, 1
    %s67 = scalar_select %p64, %s65, %s66
    %p70 = pneg %p64
    %p71 = scmp.eq.s32.totalorder %s13, 1
    %p72 = por %p70, %p71
    %p73 = scmp.ne.s32.totalorder %s65, %s68
    %p74 = scmp.eq.s32.totalorder %s13, 0
    %p75 = por %p73, %p74
    %p76 = scmp.ne.s32.totalorder %s65, %s68
    %p77 = scmp.eq.s32.totalorder %s18, 1
    %p78 = por %p76, %p77
    %p79 = scmp.ne.s32.totalorder %s68, %s69
    %p80 = scmp.eq.s32.totalorder %s18, 0
    %p81 = por %p79, %p80
    %p82 = scmp.ne.s32.totalorder %s68, %s69
    %p83 = scmp.eq.s32.totalorder %s19, 1
    %p84 = por %p82, %p83
    %p86 = scmp.ne.s32.totalorder %s69, %s85
    %p87 = scmp.eq.s32.totalorder %s19, 0
    %p88 = por %p86, %p87
    %s89 = ssub.s32 %s13, %s20
    %p90 = scmp.eq.s32.totalorder %s89, 0
    %s92 = sadd.s32 %s91, 1
    %s93 = scalar_select %p90, %s91, %s92
    %p96 = pneg %p90
    %p97 = scmp.eq.s32.totalorder %s13, 1
    %p98 = por %p96, %p97
    %p99 = scmp.ne.s32.totalorder %s91, %s94
    %p100 = scmp.eq.s32.totalorder %s13, 0
    %p101 = por %p99, %p100
    %p102 = scmp.ne.s32.totalorder %s91, %s94
    %p103 = scmp.eq.s32.totalorder %s18, 1
    %p104 = por %p102, %p103
    %p105 = scmp.ne.s32.totalorder %s94, %s95
    %p106 = scmp.eq.s32.totalorder %s18, 0
    %p107 = por %p105, %p106
    %p108 = scmp.ne.s32.totalorder %s94, %s95
    %p109 = scmp.eq.s32.totalorder %s19, 1
    %p110 = por %p108, %p109
    %p112 = scmp.ne.s32.totalorder %s95, %s111
    %p113 = scmp.eq.s32.totalorder %s19, 0
    %p114 = por %p112, %p113
    %s115 = ssub.s32 %s13, %s20
    %p116 = scmp.eq.s32.totalorder %s115, 0
    %s118 = sadd.s32 %s117, 1
    %s119 = scalar_select %p116, %s117, %s118
    %p122 = pneg %p116
    %p123 = scmp.eq.s32.totalorder %s13, 1
    %p124 = por %p122, %p123
    %p125 = scmp.ne.s32.totalorder %s117, %s120
    %p126 = scmp.eq.s32.totalorder %s13, 0
    %p127 = por %p125, %p126
    %p128 = scmp.ne.s32.totalorder %s117, %s120
    %p129 = scmp.eq.s32.totalorder %s18, 1
    %p130 = por %p128, %p129
    %p131 = scmp.ne.s32.totalorder %s120, %s121
    %p132 = scmp.eq.s32.totalorder %s18, 0
    %p133 = por %p131, %p132
    %p134 = scmp.ne.s32.totalorder %s120, %s121
    %p135 = scmp.eq.s32.totalorder %s19, 1
    %p136 = por %p134, %p135
    %p138 = scmp.ne.s32.totalorder %s121, %s137
    %p139 = scmp.eq.s32.totalorder %s19, 0
    %p140 = por %p138, %p139
    %s141 = ssub.s32 %s13, %s20
    %p142 = scmp.eq.s32.totalorder %s141, 0
    %s144 = sadd.s32 %s143, 1
    %s145 = scalar_select %p142, %s143, %s144
    %p148 = pneg %p142
    %p149 = scmp.eq.s32.totalorder %s13, 1
    %p150 = por %p148, %p149
    %p151 = scmp.ne.s32.totalorder %s143, %s146
    %p152 = scmp.eq.s32.totalorder %s13, 0
    %p153 = por %p151, %p152
    %p154 = scmp.ne.s32.totalorder %s143, %s146
    %p155 = scmp.eq.s32.totalorder %s18, 1
    %p156 = por %p154, %p155
    %p157 = scmp.ne.s32.totalorder %s146, %s147
    %p158 = scmp.eq.s32.totalorder %s18, 0
    %p159 = por %p157, %p158
    %p160 = scmp.ne.s32.totalorder %s146, %s147
    %p161 = scmp.eq.s32.totalorder %s19, 1
    %p162 = por %p160, %p161
    %p164 = scmp.ne.s32.totalorder %s147, %s163
    %p165 = scmp.eq.s32.totalorder %s19, 0
    %p166 = por %p164, %p165
    %s167 = ssub.s32 %s13, %s20
    %p168 = scmp.eq.s32.totalorder %s167, 0
    %s170 = sadd.s32 %s169, 1
    %s171 = scalar_select %p168, %s169, %s170
    %p174 = pneg %p168
    %p175 = scmp.eq.s32.totalorder %s13, 1
    %p176 = por %p174, %p175
    %p177 = scmp.ne.s32.totalorder %s169, %s172
    %p178 = scmp.eq.s32.totalorder %s13, 0
    %p179 = por %p177, %p178
    %p180 = scmp.ne.s32.totalorder %s169, %s172
    %p181 = scmp.eq.s32.totalorder %s18, 1
    %p182 = por %p180, %p181
    %p183 = scmp.ne.s32.totalorder %s172, %s173
    %p184 = scmp.eq.s32.totalorder %s18, 0
    %p185 = por %p183, %p184
    %p186 = scmp.ne.s32.totalorder %s172, %s173
    %p187 = scmp.eq.s32.totalorder %s19, 1
    %p188 = por %p186, %p187
    %p190 = scmp.ne.s32.totalorder %s173, %s189
    %p191 = scmp.eq.s32.totalorder %s19, 0
    %p192 = por %p190, %p191
    %p193 = scmp.le.s32.totalorder 1, %s13
    %p194 = scmp.lt.s32.totalorder %s13, 3
    %p195 = pnand %p193, %p194
    %p196 = pneg %p195
    // Predicated region
    $region9: #{encoder_forward.2} parent=5 // pred_check
      _
    $region10: #{encoder_forward.2} parent=5 // pred_check_branch
      %198 = sbr.rel (%p195) target = $region12
    $region11: #{encoder_forward.2} parent=5 // pred_region
      %s199 = ssub.s32 %s13, 1
      // Predicated region
      $region13: #{encoder_forward.2} parent=11 // pred_check
        %p200 = pneg %p34
      $region14: #{encoder_forward.2} parent=11 // pred_check_branch
        %202 = sbr.rel (%p200) target = $region16
      $region15: #{encoder_forward.2} parent=11 // pred_region
        _
      $region16: #{encoder_forward.2} parent=11 // pred_fallthru
        _
      // Predicated region
      $region17: #{encoder_forward.2} parent=11 // pred_check
        %p203 = pneg %p55
      $region18: #{encoder_forward.2} parent=11 // pred_check_branch
        %205 = sbr.rel (%p203) target = $region20
      $region19: #{encoder_forward.2} parent=11 // pred_region
        _
      $region20: #{encoder_forward.2} parent=11 // pred_fallthru
        _
    $region12: #{encoder_forward.2} parent=5 // pred_fallthru
      _
    %p206 = scmp.lt.s32.totalorder %s13, 2
    // Predicated region
    $region21: #{encoder_forward.2} parent=5 // pred_check
      %p207 = pneg %p206
    $region22: #{encoder_forward.2} parent=5 // pred_check_branch
      %209 = sbr.rel (%p207) target = $region24
    $region23: #{encoder_forward.2} parent=5 // pred_region
      // Predicated region
      $region25: #{encoder_forward.2} parent=23 // pred_check
        %p210 = pneg %p75
      $region26: #{encoder_forward.2} parent=23 // pred_check_branch
        %212 = sbr.rel (%p210) target = $region28
      $region27: #{encoder_forward.2} parent=23 // pred_region
        %p213 = scmp.lt.s32.totalorder %s13, 1
        %s214 = scalar_select %p213, %s13, 1
        %s215 = smul.addr %s214, 6
        %s216 = smul.addr %s215, 8
        %s217 = scalar_lea.vmem %s2, %s216
      $region28: #{encoder_forward.2} parent=23 // pred_fallthru
        _
      // Predicated region
      $region29: #{encoder_forward.2} parent=23 // pred_check
        %p218 = pneg %p101
      $region30: #{encoder_forward.2} parent=23 // pred_check_branch
        %220 = sbr.rel (%p218) target = $region32
      $region31: #{encoder_forward.2} parent=23 // pred_region
        %p221 = scmp.lt.s32.totalorder %s13, 1
        %s222 = scalar_select %p221, %s13, 1
        %s223 = scalar_lea.vmem %s3, %s222
      $region32: #{encoder_forward.2} parent=23 // pred_fallthru
        _
    $region24: #{encoder_forward.2} parent=5 // pred_fallthru
      _
    %p224 = scmp.le.s32.totalorder 1, %s13
    %p225 = scmp.lt.s32.totalorder %s13, 3
    %p226 = pnand %p224, %p225
    %p227 = pneg %p226
    // Predicated region
    $region33: #{encoder_forward.2} parent=5 // pred_check
      _
    $region34: #{encoder_forward.2} parent=5 // pred_check_branch
      %229 = sbr.rel (%p226) target = $region36
    $region35: #{encoder_forward.2} parent=5 // pred_region
      %s230 = ssub.s32 %s13, 1
      %p231 = pneg %p34
      %p232 = pneg %p31
      %p233 = pneg %p55
      %p234 = pneg %p52
      %p235 = scmp.lt.s32.totalorder %s18, 1
      %s236 = scalar_select %p235, %s18, 1
      %s237 = smul.addr %s236, 6
      %s238 = smul.addr %s237, 8
      %s239 = scalar_lea.vmem %s2, %s238
      %p240 = pneg %p81
      %p241 = pneg %p78
      %p242 = scmp.lt.s32.totalorder %s18, 1
      %s243 = scalar_select %p242, %s18, 1
      %s244 = scalar_lea.vmem %s3, %s243
      %p245 = pneg %p107
      %p246 = pneg %p104
      %p247 = pneg %p133
      %p248 = pneg %p130
      %p249 = scmp.lt.s32.totalorder %s18, 1
      %s250 = scalar_select %p249, %s18, 1
      %s251 = smul.addr %s250, 8
      %s252 = smul.addr %s251, 2
      %s253 = scalar_lea.vmem %s4, %s252
      %p254 = pneg %p159
      %p255 = pneg %p156
      %p256 = scmp.lt.s32.totalorder %s18, 1
      %s257 = scalar_select %p256, %s18, 1
      %s258 = smul.addr %s257, 2
      %s259 = scalar_lea.vmem %s5, %s258
      %p260 = pneg %p185
      %p261 = pneg %p182
      %p262 = scmp.lt.s32.totalorder %s18, 1
      %s263 = scalar_select %p262, %s18, 1
      %s264 = smul.addr %s263, 2
      %s265 = scalar_lea.vmem %s6, %s264
      %p266 = scmp.lt.s32.totalorder %s18, 1
      %s267 = scalar_select %p266, %s18, 1
      %s268 = smul.addr %s267, 6
      %s269 = smul.addr %s268, 8
      %s270 = scalar_lea.vmem %s2, %s269
      %p271 = scmp.lt.s32.totalorder %s18, 1
      %s272 = scalar_select %p271, %s18, 1
      %s273 = scalar_lea.vmem %s3, %s272
      %p274 = scmp.lt.s32.totalorder %s18, 1
      %s275 = scalar_select %p274, %s18, 1
      %s276 = smul.addr %s275, 8
      %s277 = smul.addr %s276, 2
      %s278 = scalar_lea.vmem %s4, %s277
      %p279 = scmp.lt.s32.totalorder %s18, 1
      %s280 = scalar_select %p279, %s18, 1
      %s281 = smul.addr %s280, 2
      %s282 = scalar_lea.vmem %s5, %s281
      %p283 = scmp.lt.s32.totalorder %s18, 1
      %s284 = scalar_select %p283, %s18, 1
      %s285 = smul.addr %s284, 2
      %s286 = scalar_lea.vmem %s6, %s285
      %p287 = scmp.gt.s32.totalorder %s18, 0
      %v288 = vld [vmem:[%s0] sm:$0x3]
      %v289 = vld [vmem:[%s270] sm:$0xff]
      %v290 = vld [vmem:[%s270 + $0x8] sm:$0xff]
      %v291 = vld [vmem:[%s270 + $0x10] sm:$0xff]
      %v292 = vld [vmem:[%s270 + $0x18] sm:$0xff]
      %v293 = vld [vmem:[%s270 + $0x20] sm:$0xff]
      %v294 = vld [vmem:[%s270 + $0x28] sm:$0xff]
      %v295 = vld [vmem:[%s273] sm:$0x1]
      %s296 = scalar_select %p287, 7, 0
      %s297 = smul.u32 %s296, 2
      %s298 = scalar_lea.vmem %s1, %s297
      %v299 = vld [vmem:[%s298] sm:$0x3]
      %vm300 = vcmask 261120
      %v301 = vsel %vm300, %v299, 0.0
      %v303 = vlaneseq
      %v304 = vshrl.u32 %v303, 7
      %v305 = vsub.s32 0, %v304
      %v306 = vrot.slane %v295, %v305
      %vm308 = vcmask 392192
      %v310 = vsel %vm308, %v301, 0
      %312 = vmatprep.subr.mxu0 0.0
      %313 = vmatpush1.msra.mxu0 %v289
      %314 = vmatprep.subr.mxu0 0.0
      %315 = vmatpush1.msra.mxu0 %v290
      %316 = vmatprep.subr.mxu0 0.0
      %317 = vmatpush1.msra.mxu0 %v291
      %318 = vmatprep.subr.mxu0 0.0
      %319 = vmatpush1.msra.mxu0 %v292
      %320 = vmatprep.subr.mxu0 0.0
      %321 = vmatpush1.msra.mxu0 %v293
      %322 = vmatprep.subr.mxu0 0.0
      %323 = vmatpush1.msra.mxu0 %v294
      %324 = vmatprep.subr.mxu0 0.0
      %325 = vmatpush1.msra.mxu0 0.0
      %326 = vmatprep.subr.mxu0 0.0
      %327 = vmatpush1.msra.mxu0 0.0
      %328 = vmatprep.subr.mxu0 0.0
      %329 = vmatpush1.msra.mxu0 0.0
      %330 = vmatprep.subr.mxu0 0.0
      %331 = vmatpush1.msra.mxu0 0.0
      %332 = vmatprep.subr.mxu0 0.0
      %333 = vmatpush1.msra.mxu0 0.0
      %334 = vmatprep.subr.mxu0 0.0
      %335 = vmatpush1.msra.mxu0 0.0
      %336 = vmatprep.subr.mxu0 0.0
      %337 = vmatpush1.msra.mxu0 0.0
      %338 = vmatprep.subr.mxu0 0.0
      %339 = vmatpush1.msra.mxu0 0.0
      %340 = vmatprep.subr.mxu0 0.0
      %341 = vmatpush1.msra.mxu0 0.0
      %342 = vmatprep.subr.mxu0 0.0
      %343 = vmatpush1.msra.mxu0 0.0
      %344 = vmatprep.subr.mxu0 0.0
      %345 = vmatpush1.msra.mxu0 0.0
      %346 = vmatprep.subr.mxu0 0.0
      %347 = vmatpush1.msra.mxu0 0.0
      %348 = vmatprep.subr.mxu0 0.0
      %349 = vmatpush1.msra.mxu0 0.0
      %350 = vmatprep.subr.mxu0 0.0
      %351 = vmatpush1.msra.mxu0 0.0
      %352 = vmatprep.subr.mxu0 0.0
      %353 = vmatpush1.msra.mxu0 0.0
      %354 = vmatprep.subr.mxu0 0.0
      %355 = vmatpush1.msra.mxu0 0.0
      %356 = vmatprep.subr.mxu0 0.0
      %357 = vmatpush1.msra.mxu0 0.0
      %358 = vmatprep.subr.mxu0 0.0
      %359 = vmatpush1.msra.mxu0 0.0
      %360 = vmatprep.subr.mxu0 0.0
      %361 = vmatpush1.msra.mxu0 0.0
      %362 = vmatprep.subr.mxu0 0.0
      %363 = vmatpush1.msra.mxu0 0.0
      %364 = vmatprep.subr.mxu0 0.0
      %365 = vmatpush1.msra.mxu0 0.0
      %366 = vmatprep.subr.mxu0 0.0
      %367 = vmatpush1.msra.mxu0 0.0
      %368 = vmatprep.subr.mxu0 0.0
      %369 = vmatpush1.msra.mxu0 0.0
      %370 = vmatprep.subr.mxu0 0.0
      %371 = vmatpush1.msra.mxu0 0.0
      %372 = vmatprep.subr.mxu0 0.0
      %373 = vmatpush1.msra.mxu0 0.0
      %374 = vmatprep.subr.mxu0 0.0
      %375 = vmatpush1.msra.mxu0 0.0
      %376 = vmatprep.mubr.f32.mxu0 0.0
      %377 = vmatmul.mubr.f32.gmra.mrb[0].mxu0 %v310
      %v378 = vpop.f32.mrb[0].mxu0
      %v379 = vadd.f32 %v306, %v378
      %v380 = vpop.f32.mrb[0].mxu0
      %381 = vdwg.mxu0
      %v382 = vxor.u32 %v379, 2147483648
      %v383 = vmul.f32 %v382, 1.442695
      %v384 = vpow.pop %v383
      %v385 = vadd.f32 %v384, 1.0
      %v386 = vrcp.pop %v385
      %v387 = vmul.f32 1.0, %v386
      %v388 = vtanh.pop %v379
      %v389 = vmul.f32 %v387, 0.0
      %391 = vrot.lane.b32.xlu0 %v388, 80
      %v392 = vpop.permute.xlu0 %391
      %v394 = vmul.f32 %v387, %v392
      %396 = vrot.lane.b32.xlu0 %v394, 16
      %v397 = vpop.permute.xlu0 %396
      %v399 = vadd.f32 %v389, %v397
      %v400 = vtanh.pop %v399
      %402 = vrot.lane.b32.xlu0 %v400, 16
      %v403 = vpop.permute.xlu0 %402
      %v405 = vmul.f32 %v387, %v403
      %v406 = vstv %s296
      %vm407 = vcmp.lt.s32.totalorder %v406, %v288
      %v408 = vsel %vm407, 1, 0
      %409 = vset.pattern.permute.xlu0 0
      %410 = vperm.xlu0 %409, %v408
      %v411 = vpop.permute.xlu0 %410
      %vm412 = vcmp.eq.s32.totalorder %v411, 1
      %v413 = vsel %vm412, %v399, 0.0
      %v414 = vsel %vm412, %v405, 0.0
      %416 = vrot.lane.b32.xlu0 %v414, 96
      %v417 = vpop.permute.xlu0 %416
      %s419 = scalar_lea.vmem %s278, %s297
      %vm420 = vcmask 123904
      %421 = vst.msk [vmem:[%s419] sm:$0x3] %vm420, %v417
      %s422 = scalar_select %p287, 6, 1
      %s423 = smul.u32 %s422, 2
      %s424 = scalar_lea.vmem %s1, %s423
      %v425 = vld [vmem:[%s424] sm:$0x3]
      %v426 = vsel %vm300, %v425, %v414
      %v428 = vsel %vm308, %v426, 0
      %430 = vmatprep.subr.mxu0 0.0
      %431 = vmatpush1.msra.mxu0 %v289
      %432 = vmatprep.subr.mxu0 0.0
      %433 = vmatpush1.msra.mxu0 %v290
      %434 = vmatprep.subr.mxu0 0.0
      %435 = vmatpush1.msra.mxu0 %v291
      %436 = vmatprep.subr.mxu0 0.0
      %437 = vmatpush1.msra.mxu0 %v292
      %438 = vmatprep.subr.mxu0 0.0
      %439 = vmatpush1.msra.mxu0 %v293
      %440 = vmatprep.subr.mxu0 0.0
      %441 = vmatpush1.msra.mxu0 %v294
      %442 = vmatprep.subr.mxu0 0.0
      %443 = vmatpush1.msra.mxu0 0.0
      %444 = vmatprep.subr.mxu0 0.0
      %445 = vmatpush1.msra.mxu0 0.0
      %446 = vmatprep.subr.mxu0 0.0
      %447 = vmatpush1.msra.mxu0 0.0
      %448 = vmatprep.subr.mxu0 0.0
      %449 = vmatpush1.msra.mxu0 0.0
      %450 = vmatprep.subr.mxu0 0.0
      %451 = vmatpush1.msra.mxu0 0.0
      %452 = vmatprep.subr.mxu0 0.0
      %453 = vmatpush1.msra.mxu0 0.0
      %454 = vmatprep.subr.mxu0 0.0
      %455 = vmatpush1.msra.mxu0 0.0
      %456 = vmatprep.subr.mxu0 0.0
      %457 = vmatpush1.msra.mxu0 0.0
      %458 = vmatprep.subr.mxu0 0.0
      %459 = vmatpush1.msra.mxu0 0.0
      %460 = vmatprep.subr.mxu0 0.0
      %461 = vmatpush1.msra.mxu0 0.0
      %462 = vmatprep.subr.mxu0 0.0
      %463 = vmatpush1.msra.mxu0 0.0
      %464 = vmatprep.subr.mxu0 0.0
      %465 = vmatpush1.msra.mxu0 0.0
      %466 = vmatprep.subr.mxu0 0.0
      %467 = vmatpush1.msra.mxu0 0.0
      %468 = vmatprep.subr.mxu0 0.0
      %469 = vmatpush1.msra.mxu0 0.0
      %470 = vmatprep.subr.mxu0 0.0
      %471 = vmatpush1.msra.mxu0 0.0
      %472 = vmatprep.subr.mxu0 0.0
      %473 = vmatpush1.msra.mxu0 0.0
      %474 = vmatprep.subr.mxu0 0.0
      %475 = vmatpush1.msra.mxu0 0.0
      %476 = vmatprep.subr.mxu0 0.0
      %477 = vmatpush1.msra.mxu0 0.0
      %478 = vmatprep.subr.mxu0 0.0
      %479 = vmatpush1.msra.mxu0 0.0
      %480 = vmatprep.subr.mxu0 0.0
      %481 = vmatpush1.msra.mxu0 0.0
      %482 = vmatprep.subr.mxu0 0.0
      %483 = vmatpush1.msra.mxu0 0.0
      %484 = vmatprep.subr.mxu0 0.0
      %485 = vmatpush1.msra.mxu0 0.0
      %486 = vmatprep.subr.mxu0 0.0
      %487 = vmatpush1.msra.mxu0 0.0
      %488 = vmatprep.subr.mxu0 0.0
      %489 = vmatpush1.msra.mxu0 0.0
      %490 = vmatprep.subr.mxu0 0.0
      %491 = vmatpush1.msra.mxu0 0.0
      %492 = vmatprep.subr.mxu0 0.0
      %493 = vmatpush1.msra.mxu0 0.0
      %494 = vmatprep.mubr.f32.mxu0 0.0
      %495 = vmatmul.mubr.f32.gmra.mrb[0].mxu0 %v428
      %v496 = vpop.f32.mrb[0].mxu0
      %v497 = vadd.f32 %v306, %v496
      %v498 = vpop.f32.mrb[0].mxu0
      %499 = vdwg.mxu0
      %v500 = vxor.u32 %v497, 2147483648
      %v501 = vmul.f32 %v500, 1.442695
      %v502 = vpow.pop %v501
      %v503 = vadd.f32 %v502, 1.0
      %v504 = vrcp.pop %v503
      %v505 = vmul.f32 1.0, %v504
      %v506 = vtanh.pop %v497
      %v507 = vmul.f32 %v505, %v413
      %509 = vrot.lane.b32.xlu0 %v506, 80
      %v510 = vpop.permute.xlu0 %509
      %v512 = vmul.f32 %v505, %v510
      %514 = vrot.lane.b32.xlu0 %v512, 16
      %v515 = vpop.permute.xlu0 %514
      %v517 = vadd.f32 %v507, %v515
      %v518 = vtanh.pop %v517
      %520 = vrot.lane.b32.xlu0 %v518, 16
      %v521 = vpop.permute.xlu0 %520
      %v523 = vmul.f32 %v505, %v521
      %v524 = vstv %s422
      %vm525 = vcmp.lt.s32.totalorder %v524, %v288
      %v526 = vsel %vm525, 1, 0
      %527 = vset.pattern.permute.xlu0 0
      %528 = vperm.xlu0 %527, %v526
      %v529 = vpop.permute.xlu0 %528
      %vm530 = vcmp.eq.s32.totalorder %v529, 1
      %v531 = vsel %vm530, %v517, %v413
      %v532 = vsel %vm530, %v523, %v414
      %v533 = vsel %vm530, %v523, 0.0
      %535 = vrot.lane.b32.xlu0 %v533, 96
      %v536 = vpop.permute.xlu0 %535
      %s538 = scalar_lea.vmem %s278, %s423
      %539 = vst.msk [vmem:[%s538] sm:$0x3] %vm420, %v536
      %s540 = scalar_select %p287, 5, 2
      %s541 = smul.u32 %s540, 2
      %s542 = scalar_lea.vmem %s1, %s541
      %v543 = vld [vmem:[%s542] sm:$0x3]
      %v544 = vsel %vm300, %v543, %v532
      %v546 = vsel %vm308, %v544, 0
      %548 = vmatprep.subr.mxu0 0.0
      %549 = vmatpush1.msra.mxu0 %v289
      %550 = vmatprep.subr.mxu0 0.0
      %551 = vmatpush1.msra.mxu0 %v290
      %552 = vmatprep.subr.mxu0 0.0
      %553 = vmatpush1.msra.mxu0 %v291
      %554 = vmatprep.subr.mxu0 0.0
      %555 = vmatpush1.msra.mxu0 %v292
      %556 = vmatprep.subr.mxu0 0.0
      %557 = vmatpush1.msra.mxu0 %v293
      %558 = vmatprep.subr.mxu0 0.0
      %559 = vmatpush1.msra.mxu0 %v294
      %560 = vmatprep.subr.mxu0 0.0
      %561 = vmatpush1.msra.mxu0 0.0
      %562 = vmatprep.subr.mxu0 0.0
      %563 = vmatpush1.msra.mxu0 0.0
      %564 = vmatprep.subr.mxu0 0.0
      %565 = vmatpush1.msra.mxu0 0.0
      %566 = vmatprep.subr.mxu0 0.0
      %567 = vmatpush1.msra.mxu0 0.0
      %568 = vmatprep.subr.mxu0 0.0
      %569 = vmatpush1.msra.mxu0 0.0
      %570 = vmatprep.subr.mxu0 0.0
      %571 = vmatpush1.msra.mxu0 0.0
      %572 = vmatprep.subr.mxu0 0.0
      %573 = vmatpush1.msra.mxu0 0.0
      %574 = vmatprep.subr.mxu0 0.0
      %575 = vmatpush1.msra.mxu0 0.0
      %576 = vmatprep.subr.mxu0 0.0
      %577 = vmatpush1.msra.mxu0 0.0
      %578 = vmatprep.subr.mxu0 0.0
      %579 = vmatpush1.msra.mxu0 0.0
      %580 = vmatprep.subr.mxu0 0.0
      %581 = vmatpush1.msra.mxu0 0.0
      %582 = vmatprep.subr.mxu0 0.0
      %583 = vmatpush1.msra.mxu0 0.0
      %584 = vmatprep.subr.mxu0 0.0
      %585 = vmatpush1.msra.mxu0 0.0
      %586 = vmatprep.subr.mxu0 0.0
      %587 = vmatpush1.msra.mxu0 0.0
      %588 = vmatprep.subr.mxu0 0.0
      %589 = vmatpush1.msra.mxu0 0.0
      %590 = vmatprep.subr.mxu0 0.0
      %591 = vmatpush1.msra.mxu0 0.0
      %592 = vmatprep.subr.mxu0 0.0
      %593 = vmatpush1.msra.mxu0 0.0
      %594 = vmatprep.subr.mxu0 0.0
      %595 = vmatpush1.msra.mxu0 0.0
      %596 = vmatprep.subr.mxu0 0.0
      %597 = vmatpush1.msra.mxu0 0.0
      %598 = vmatprep.subr.mxu0 0.0
      %599 = vmatpush1.msra.mxu0 0.0
      %600 = vmatprep.subr.mxu0 0.0
      %601 = vmatpush1.msra.mxu0 0.0
      %602 = vmatprep.subr.mxu0 0.0
      %603 = vmatpush1.msra.mxu0 0.0
      %604 = vmatprep.subr.mxu0 0.0
      %605 = vmatpush1.msra.mxu0 0.0
      %606 = vmatprep.subr.mxu0 0.0
      %607 = vmatpush1.msra.mxu0 0.0
      %608 = vmatprep.subr.mxu0 0.0
      %609 = vmatpush1.msra.mxu0 0.0
      %610 = vmatprep.subr.mxu0 0.0
      %611 = vmatpush1.msra.mxu0 0.0
      %612 = vmatprep.mubr.f32.mxu0 0.0
      %613 = vmatmul.mubr.f32.gmra.mrb[0].mxu0 %v546
      %v614 = vpop.f32.mrb[0].mxu0
      %v615 = vadd.f32 %v306, %v614
      %v616 = vpop.f32.mrb[0].mxu0
      %617 = vdwg.mxu0
      %v618 = vxor.u32 %v615, 2147483648
      %v619 = vmul.f32 %v618, 1.442695
      %v620 = vpow.pop %v619
      %v621 = vadd.f32 %v620, 1.0
      %v622 = vrcp.pop %v621
      %v623 = vmul.f32 1.0, %v622
      %v624 = vtanh.pop %v615
      %v625 = vmul.f32 %v623, %v531
      %627 = vrot.lane.b32.xlu0 %v624, 80
      %v628 = vpop.permute.xlu0 %627
      %v630 = vmul.f32 %v623, %v628
      %632 = vrot.lane.b32.xlu0 %v630, 16
      %v633 = vpop.permute.xlu0 %632
      %v635 = vadd.f32 %v625, %v633
      %v636 = vtanh.pop %v635
      %638 = vrot.lane.b32.xlu0 %v636, 16
      %v639 = vpop.permute.xlu0 %638
      %v641 = vmul.f32 %v623, %v639
      %v642 = vstv %s540
      %vm643 = vcmp.lt.s32.totalorder %v642, %v288
      %v644 = vsel %vm643, 1, 0
      %645 = vset.pattern.permute.xlu0 0
      %646 = vperm.xlu0 %645, %v644
      %v647 = vpop.permute.xlu0 %646
      %vm648 = vcmp.eq.s32.totalorder %v647, 1
      %v649 = vsel %vm648, %v635, %v531
      %v650 = vsel %vm648, %v641, %v532
      %v651 = vsel %vm648, %v641, 0.0
      %653 = vrot.lane.b32.xlu0 %v651, 96
      %v654 = vpop.permute.xlu0 %653
      %s656 = scalar_lea.vmem %s278, %s541
      %657 = vst.msk [vmem:[%s656] sm:$0x3] %vm420, %v654
      %s658 = scalar_select %p287, 4, 3
      %s659 = smul.u32 %s658, 2
      %s660 = scalar_lea.vmem %s1, %s659
      %v661 = vld [vmem:[%s660] sm:$0x3]
      %v662 = vsel %vm300, %v661, %v650
      %v664 = vsel %vm308, %v662, 0
      %666 = vmatprep.subr.mxu0 0.0
      %667 = vmatpush1.msra.mxu0 %v289
      %668 = vmatprep.subr.mxu0 0.0
      %669 = vmatpush1.msra.mxu0 %v290
      %670 = vmatprep.subr.mxu0 0.0
      %671 = vmatpush1.msra.mxu0 %v291
      %672 = vmatprep.subr.mxu0 0.0
      %673 = vmatpush1.msra.mxu0 %v292
      %674 = vmatprep.subr.mxu0 0.0
      %675 = vmatpush1.msra.mxu0 %v293
      %676 = vmatprep.subr.mxu0 0.0
      %677 = vmatpush1.msra.mxu0 %v294
      %678 = vmatprep.subr.mxu0 0.0
      %679 = vmatpush1.msra.mxu0 0.0
      %680 = vmatprep.subr.mxu0 0.0
      %681 = vmatpush1.msra.mxu0 0.0
      %682 = vmatprep.subr.mxu0 0.0
      %683 = vmatpush1.msra.mxu0 0.0
      %684 = vmatprep.subr.mxu0 0.0
      %685 = vmatpush1.msra.mxu0 0.0
      %686 = vmatprep.subr.mxu0 0.0
      %687 = vmatpush1.msra.mxu0 0.0
      %688 = vmatprep.subr.mxu0 0.0
      %689 = vmatpush1.msra.mxu0 0.0
      %690 = vmatprep.subr.mxu0 0.0
      %691 = vmatpush1.msra.mxu0 0.0
      %692 = vmatprep.subr.mxu0 0.0
      %693 = vmatpush1.msra.mxu0 0.0
      %694 = vmatprep.subr.mxu0 0.0
      %695 = vmatpush1.msra.mxu0 0.0
      %696 = vmatprep.subr.mxu0 0.0
      %697 = vmatpush1.msra.mxu0 0.0
      %698 = vmatprep.subr.mxu0 0.0
      %699 = vmatpush1.msra.mxu0 0.0
      %700 = vmatprep.subr.mxu0 0.0
      %701 = vmatpush1.msra.mxu0 0.0
      %702 = vmatprep.subr.mxu0 0.0
      %703 = vmatpush1.msra.mxu0 0.0
      %704 = vmatprep.subr.mxu0 0.0
      %705 = vmatpush1.msra.mxu0 0.0
      %706 = vmatprep.subr.mxu0 0.0
      %707 = vmatpush1.msra.mxu0 0.0
      %708 = vmatprep.subr.mxu0 0.0
      %709 = vmatpush1.msra.mxu0 0.0
      %710 = vmatprep.subr.mxu0 0.0
      %711 = vmatpush1.msra.mxu0 0.0
      %712 = vmatprep.subr.mxu0 0.0
      %713 = vmatpush1.msra.mxu0 0.0
      %714 = vmatprep.subr.mxu0 0.0
      %715 = vmatpush1.msra.mxu0 0.0
      %716 = vmatprep.subr.mxu0 0.0
      %717 = vmatpush1.msra.mxu0 0.0
      %718 = vmatprep.subr.mxu0 0.0
      %719 = vmatpush1.msra.mxu0 0.0
      %720 = vmatprep.subr.mxu0 0.0
      %721 = vmatpush1.msra.mxu0 0.0
      %722 = vmatprep.subr.mxu0 0.0
      %723 = vmatpush1.msra.mxu0 0.0
      %724 = vmatprep.subr.mxu0 0.0
      %725 = vmatpush1.msra.mxu0 0.0
      %726 = vmatprep.subr.mxu0 0.0
      %727 = vmatpush1.msra.mxu0 0.0
      %728 = vmatprep.subr.mxu0 0.0
      %729 = vmatpush1.msra.mxu0 0.0
      %730 = vmatprep.mubr.f32.mxu0 0.0
      %731 = vmatmul.mubr.f32.gmra.mrb[0].mxu0 %v664
      %v732 = vpop.f32.mrb[0].mxu0
      %v733 = vadd.f32 %v306, %v732
      %v734 = vpop.f32.mrb[0].mxu0
      %735 = vdwg.mxu0
      %v736 = vxor.u32 %v733, 2147483648
      %v737 = vmul.f32 %v736, 1.442695
      %v738 = vpow.pop %v737
      %v739 = vadd.f32 %v738, 1.0
      %v740 = vrcp.pop %v739
      %v741 = vmul.f32 1.0, %v740
      %v742 = vtanh.pop %v733
      %v743 = vmul.f32 %v741, %v649
      %745 = vrot.lane.b32.xlu0 %v742, 80
      %v746 = vpop.permute.xlu0 %745
      %v748 = vmul.f32 %v741, %v746
      %750 = vrot.lane.b32.xlu0 %v748, 16
      %v751 = vpop.permute.xlu0 %750
      %v753 = vadd.f32 %v743, %v751
      %v754 = vtanh.pop %v753
      %756 = vrot.lane.b32.xlu0 %v754, 16
      %v757 = vpop.permute.xlu0 %756
      %v759 = vmul.f32 %v741, %v757
      %v760 = vstv %s658
      %vm761 = vcmp.lt.s32.totalorder %v760, %v288
      %v762 = vsel %vm761, 1, 0
      %763 = vset.pattern.permute.xlu0 0
      %764 = vperm.xlu0 %763, %v762
      %v765 = vpop.permute.xlu0 %764
      %vm766 = vcmp.eq.s32.totalorder %v765, 1
      %v767 = vsel %vm766, %v753, %v649
      %v768 = vsel %vm766, %v759, %v650
      %v769 = vsel %vm766, %v759, 0.0
      %771 = vrot.lane.b32.xlu0 %v769, 96
      %v772 = vpop.permute.xlu0 %771
      %s774 = scalar_lea.vmem %s278, %s659
      %775 = vst.msk [vmem:[%s774] sm:$0x3] %vm420, %v772
      %s776 = scalar_select %p287, 3, 4
      %s777 = smul.u32 %s776, 2
      %s778 = scalar_lea.vmem %s1, %s777
      %v779 = vld [vmem:[%s778] sm:$0x3]
      %v780 = vsel %vm300, %v779, %v768
      %v782 = vsel %vm308, %v780, 0
      %784 = vmatprep.subr.mxu0 0.0
      %785 = vmatpush1.msra.mxu0 %v289
      %786 = vmatprep.subr.mxu0 0.0
      %787 = vmatpush1.msra.mxu0 %v290
      %788 = vmatprep.subr.mxu0 0.0
      %789 = vmatpush1.msra.mxu0 %v291
      %790 = vmatprep.subr.mxu0 0.0
      %791 = vmatpush1.msra.mxu0 %v292
      %792 = vmatprep.subr.mxu0 0.0
      %793 = vmatpush1.msra.mxu0 %v293
      %794 = vmatprep.subr.mxu0 0.0
      %795 = vmatpush1.msra.mxu0 %v294
      %796 = vmatprep.subr.mxu0 0.0
      %797 = vmatpush1.msra.mxu0 0.0
      %798 = vmatprep.subr.mxu0 0.0
      %799 = vmatpush1.msra.mxu0 0.0
      %800 = vmatprep.subr.mxu0 0.0
      %801 = vmatpush1.msra.mxu0 0.0
      %802 = vmatprep.subr.mxu0 0.0
      %803 = vmatpush1.msra.mxu0 0.0
      %804 = vmatprep.subr.mxu0 0.0
      %805 = vmatpush1.msra.mxu0 0.0
      %806 = vmatprep.subr.mxu0 0.0
      %807 = vmatpush1.msra.mxu0 0.0
      %808 = vmatprep.subr.mxu0 0.0
      %809 = vmatpush1.msra.mxu0 0.0
      %810 = vmatprep.subr.mxu0 0.0
      %811 = vmatpush1.msra.mxu0 0.0
      %812 = vmatprep.subr.mxu0 0.0
      %813 = vmatpush1.msra.mxu0 0.0
      %814 = vmatprep.subr.mxu0 0.0
      %815 = vmatpush1.msra.mxu0 0.0
      %816 = vmatprep.subr.mxu0 0.0
      %817 = vmatpush1.msra.mxu0 0.0
      %818 = vmatprep.subr.mxu0 0.0
      %819 = vmatpush1.msra.mxu0 0.0
      %820 = vmatprep.subr.mxu0 0.0
      %821 = vmatpush1.msra.mxu0 0.0
      %822 = vmatprep.subr.mxu0 0.0
      %823 = vmatpush1.msra.mxu0 0.0
      %824 = vmatprep.subr.mxu0 0.0
      %825 = vmatpush1.msra.mxu0 0.0
      %826 = vmatprep.subr.mxu0 0.0
      %827 = vmatpush1.msra.mxu0 0.0
      %828 = vmatprep.subr.mxu0 0.0
      %829 = vmatpush1.msra.mxu0 0.0
      %830 = vmatprep.subr.mxu0 0.0
      %831 = vmatpush1.msra.mxu0 0.0
      %832 = vmatprep.subr.mxu0 0.0
      %833 = vmatpush1.msra.mxu0 0.0
      %834 = vmatprep.subr.mxu0 0.0
      %835 = vmatpush1.msra.mxu0 0.0
      %836 = vmatprep.subr.mxu0 0.0
      %837 = vmatpush1.msra.mxu0 0.0
      %838 = vmatprep.subr.mxu0 0.0
      %839 = vmatpush1.msra.mxu0 0.0
      %840 = vmatprep.subr.mxu0 0.0
      %841 = vmatpush1.msra.mxu0 0.0
      %842 = vmatprep.subr.mxu0 0.0
      %843 = vmatpush1.msra.mxu0 0.0
      %844 = vmatprep.subr.mxu0 0.0
      %845 = vmatpush1.msra.mxu0 0.0
      %846 = vmatprep.subr.mxu0 0.0
      %847 = vmatpush1.msra.mxu0 0.0
      %848 = vmatprep.mubr.f32.mxu0 0.0
      %849 = vmatmul.mubr.f32.gmra.mrb[0].mxu0 %v782
      %v850 = vpop.f32.mrb[0].mxu0
      %v851 = vadd.f32 %v306, %v850
      %v852 = vpop.f32.mrb[0].mxu0
      %853 = vdwg.mxu0
      %v854 = vxor.u32 %v851, 2147483648
      %v855 = vmul.f32 %v854, 1.442695
      %v856 = vpow.pop %v855
      %v857 = vadd.f32 %v856, 1.0
      %v858 = vrcp.pop %v857
      %v859 = vmul.f32 1.0, %v858
      %v860 = vtanh.pop %v851
      %v861 = vmul.f32 %v859, %v767
      %863 = vrot.lane.b32.xlu0 %v860, 80
      %v864 = vpop.permute.xlu0 %863
      %v866 = vmul.f32 %v859, %v864
      %868 = vrot.lane.b32.xlu0 %v866, 16
      %v869 = vpop.permute.xlu0 %868
      %v871 = vadd.f32 %v861, %v869
      %v872 = vtanh.pop %v871
      %874 = vrot.lane.b32.xlu0 %v872, 16
      %v875 = vpop.permute.xlu0 %874
      %v877 = vmul.f32 %v859, %v875
      %v878 = vstv %s776
      %vm879 = vcmp.lt.s32.totalorder %v878, %v288
      %v880 = vsel %vm879, 1, 0
      %881 = vset.pattern.permute.xlu0 0
      %882 = vperm.xlu0 %881, %v880
      %v883 = vpop.permute.xlu0 %882
      %vm884 = vcmp.eq.s32.totalorder %v883, 1
      %v885 = vsel %vm884, %v871, %v767
      %v886 = vsel %vm884, %v877, %v768
      %v887 = vsel %vm884, %v877, 0.0
      %889 = vrot.lane.b32.xlu0 %v887, 96
      %v890 = vpop.permute.xlu0 %889
      %s892 = scalar_lea.vmem %s278, %s777
      %893 = vst.msk [vmem:[%s892] sm:$0x3] %vm420, %v890
      %s894 = scalar_select %p287, 2, 5
      %s895 = smul.u32 %s894, 2
      %s896 = scalar_lea.vmem %s1, %s895
      %v897 = vld [vmem:[%s896] sm:$0x3]
      %v898 = vsel %vm300, %v897, %v886
      %v900 = vsel %vm308, %v898, 0
      %902 = vmatprep.subr.mxu0 0.0
      %903 = vmatpush1.msra.mxu0 %v289
      %904 = vmatprep.subr.mxu0 0.0
      %905 = vmatpush1.msra.mxu0 %v290
      %906 = vmatprep.subr.mxu0 0.0
      %907 = vmatpush1.msra.mxu0 %v291
      %908 = vmatprep.subr.mxu0 0.0
      %909 = vmatpush1.msra.mxu0 %v292
      %910 = vmatprep.subr.mxu0 0.0
      %911 = vmatpush1.msra.mxu0 %v293
      %912 = vmatprep.subr.mxu0 0.0
      %913 = vmatpush1.msra.mxu0 %v294
      %914 = vmatprep.subr.mxu0 0.0
      %915 = vmatpush1.msra.mxu0 0.0
      %916 = vmatprep.subr.mxu0 0.0
      %917 = vmatpush1.msra.mxu0 0.0
      %918 = vmatprep.subr.mxu0 0.0
      %919 = vmatpush1.msra.mxu0 0.0
      %920 = vmatprep.subr.mxu0 0.0
      %921 = vmatpush1.msra.mxu0 0.0
      %922 = vmatprep.subr.mxu0 0.0
      %923 = vmatpush1.msra.mxu0 0.0
      %924 = vmatprep.subr.mxu0 0.0
      %925 = vmatpush1.msra.mxu0 0.0
      %926 = vmatprep.subr.mxu0 0.0
      %927 = vmatpush1.msra.mxu0 0.0
      %928 = vmatprep.subr.mxu0 0.0
      %929 = vmatpush1.msra.mxu0 0.0
      %930 = vmatprep.subr.mxu0 0.0
      %931 = vmatpush1.msra.mxu0 0.0
      %932 = vmatprep.subr.mxu0 0.0
      %933 = vmatpush1.msra.mxu0 0.0
      %934 = vmatprep.subr.mxu0 0.0
      %935 = vmatpush1.msra.mxu0 0.0
      %936 = vmatprep.subr.mxu0 0.0
      %937 = vmatpush1.msra.mxu0 0.0
      %938 = vmatprep.subr.mxu0 0.0
      %939 = vmatpush1.msra.mxu0 0.0
      %940 = vmatprep.subr.mxu0 0.0
      %941 = vmatpush1.msra.mxu0 0.0
      %942 = vmatprep.subr.mxu0 0.0
      %943 = vmatpush1.msra.mxu0 0.0
      %944 = vmatprep.subr.mxu0 0.0
      %945 = vmatpush1.msra.mxu0 0.0
      %946 = vmatprep.subr.mxu0 0.0
      %947 = vmatpush1.msra.mxu0 0.0
      %948 = vmatprep.subr.mxu0 0.0
      %949 = vmatpush1.msra.mxu0 0.0
      %950 = vmatprep.subr.mxu0 0.0
      %951 = vmatpush1.msra.mxu0 0.0
      %952 = vmatprep.subr.mxu0 0.0
      %953 = vmatpush1.msra.mxu0 0.0
      %954 = vmatprep.subr.mxu0 0.0
      %955 = vmatpush1.msra.mxu0 0.0
      %956 = vmatprep.subr.mxu0 0.0
      %957 = vmatpush1.msra.mxu0 0.0
      %958 = vmatprep.subr.mxu0 0.0
      %959 = vmatpush1.msra.mxu0 0.0
      %960 = vmatprep.subr.mxu0 0.0
      %961 = vmatpush1.msra.mxu0 0.0
      %962 = vmatprep.subr.mxu0 0.0
      %963 = vmatpush1.msra.mxu0 0.0
      %964 = vmatprep.subr.mxu0 0.0
      %965 = vmatpush1.msra.mxu0 0.0
      %966 = vmatprep.mubr.f32.mxu0 0.0
      %967 = vmatmul.mubr.f32.gmra.mrb[0].mxu0 %v900
      %v968 = vpop.f32.mrb[0].mxu0
      %v969 = vadd.f32 %v306, %v968
      %v970 = vpop.f32.mrb[0].mxu0
      %971 = vdwg.mxu0
      %v972 = vxor.u32 %v969, 2147483648
      %v973 = vmul.f32 %v972, 1.442695
      %v974 = vpow.pop %v973
      %v975 = vadd.f32 %v974, 1.0
      %v976 = vrcp.pop %v975
      %v977 = vmul.f32 1.0, %v976
      %v978 = vtanh.pop %v969
      %v979 = vmul.f32 %v977, %v885
      %981 = vrot.lane.b32.xlu0 %v978, 80
      %v982 = vpop.permute.xlu0 %981
      %v984 = vmul.f32 %v977, %v982
      %986 = vrot.lane.b32.xlu0 %v984, 16
      %v987 = vpop.permute.xlu0 %986
      %v989 = vadd.f32 %v979, %v987
      %v990 = vtanh.pop %v989
      %992 = vrot.lane.b32.xlu0 %v990, 16
      %v993 = vpop.permute.xlu0 %992
      %v995 = vmul.f32 %v977, %v993
      %v996 = vstv %s894
      %vm997 = vcmp.lt.s32.totalorder %v996, %v288
      %v998 = vsel %vm997, 1, 0
      %999 = vset.pattern.permute.xlu0 0
      %1000 = vperm.xlu0 %999, %v998
      %v1001 = vpop.permute.xlu0 %1000
      %vm1002 = vcmp.eq.s32.totalorder %v1001, 1
      %v1003 = vsel %vm1002, %v989, %v885
      %v1004 = vsel %vm1002, %v995, %v886
      %v1005 = vsel %vm1002, %v995, 0.0
      %1007 = vrot.lane.b32.xlu0 %v1005, 96
      %v1008 = vpop.permute.xlu0 %1007
      %s1010 = scalar_lea.vmem %s278, %s895
      %1011 = vst.msk [vmem:[%s1010] sm:$0x3] %vm420, %v1008
      %s1012 = scalar_select %p287, 1, 6
      %s1013 = smul.u32 %s1012, 2
      %s1014 = scalar_lea.vmem %s1, %s1013
      %v1015 = vld [vmem:[%s1014] sm:$0x3]
      %v1016 = vsel %vm300, %v1015, %v1004
      %v1018 = vsel %vm308, %v1016, 0
      %1020 = vmatprep.subr.mxu0 0.0
      %1021 = vmatpush1.msra.mxu0 %v289
      %1022 = vmatprep.subr.mxu0 0.0
      %1023 = vmatpush1.msra.mxu0 %v290
      %1024 = vmatprep.subr.mxu0 0.0
      %1025 = vmatpush1.msra.mxu0 %v291
      %1026 = vmatprep.subr.mxu0 0.0
      %1027 = vmatpush1.msra.mxu0 %v292
      %1028 = vmatprep.subr.mxu0 0.0
      %1029 = vmatpush1.msra.mxu0 %v293
      %1030 = vmatprep.subr.mxu0 0.0
      %1031 = vmatpush1.msra.mxu0 %v294
      %1032 = vmatprep.subr.mxu0 0.0
      %1033 = vmatpush1.msra.mxu0 0.0
      %1034 = vmatprep.subr.mxu0 0.0
      %1035 = vmatpush1.msra.mxu0 0.0
      %1036 = vmatprep.subr.mxu0 0.0
      %1037 = vmatpush1.msra.mxu0 0.0
      %1038 = vmatprep.subr.mxu0 0.0
      %1039 = vmatpush1.msra.mxu0 0.0
      %1040 = vmatprep.subr.mxu0 0.0
      %1041 = vmatpush1.msra.mxu0 0.0
      %1042 = vmatprep.subr.mxu0 0.0
      %1043 = vmatpush1.msra.mxu0 0.0
      %1044 = vmatprep.subr.mxu0 0.0
      %1045 = vmatpush1.msra.mxu0 0.0
      %1046 = vmatprep.subr.mxu0 0.0
      %1047 = vmatpush1.msra.mxu0 0.0
      %1048 = vmatprep.subr.mxu0 0.0
      %1049 = vmatpush1.msra.mxu0 0.0
      %1050 = vmatprep.subr.mxu0 0.0
      %1051 = vmatpush1.msra.mxu0 0.0
      %1052 = vmatprep.subr.mxu0 0.0
      %1053 = vmatpush1.msra.mxu0 0.0
      %1054 = vmatprep.subr.mxu0 0.0
      %1055 = vmatpush1.msra.mxu0 0.0
      %1056 = vmatprep.subr.mxu0 0.0
      %1057 = vmatpush1.msra.mxu0 0.0
      %1058 = vmatprep.subr.mxu0 0.0
      %1059 = vmatpush1.msra.mxu0 0.0
      %1060 = vmatprep.subr.mxu0 0.0
      %1061 = vmatpush1.msra.mxu0 0.0
      %1062 = vmatprep.subr.mxu0 0.0
      %1063 = vmatpush1.msra.mxu0 0.0
      %1064 = vmatprep.subr.mxu0 0.0
      %1065 = vmatpush1.msra.mxu0 0.0
      %1066 = vmatprep.subr.mxu0 0.0
      %1067 = vmatpush1.msra.mxu0 0.0
      %1068 = vmatprep.subr.mxu0 0.0
      %1069 = vmatpush1.msra.mxu0 0.0
      %1070 = vmatprep.subr.mxu0 0.0
      %1071 = vmatpush1.msra.mxu0 0.0
      %1072 = vmatprep.subr.mxu0 0.0
      %1073 = vmatpush1.msra.mxu0 0.0
      %1074 = vmatprep.subr.mxu0 0.0
      %1075 = vmatpush1.msra.mxu0 0.0
      %1076 = vmatprep.subr.mxu0 0.0
      %1077 = vmatpush1.msra.mxu0 0.0
      %1078 = vmatprep.subr.mxu0 0.0
      %1079 = vmatpush1.msra.mxu0 0.0
      %1080 = vmatprep.subr.mxu0 0.0
      %1081 = vmatpush1.msra.mxu0 0.0
      %1082 = vmatprep.subr.mxu0 0.0
      %1083 = vmatpush1.msra.mxu0 0.0
      %1084 = vmatprep.mubr.f32.mxu0 0.0
      %1085 = vmatmul.mubr.f32.gmra.mrb[0].mxu0 %v1018
      %v1086 = vpop.f32.mrb[0].mxu0
      %v1087 = vadd.f32 %v306, %v1086
      %v1088 = vpop.f32.mrb[0].mxu0
      %1089 = vdwg.mxu0
      %v1090 = vxor.u32 %v1087, 2147483648
      %v1091 = vmul.f32 %v1090, 1.442695
      %v1092 = vpow.pop %v1091
      %v1093 = vadd.f32 %v1092, 1.0
      %v1094 = vrcp.pop %v1093
      %v1095 = vmul.f32 1.0, %v1094
      %v1096 = vtanh.pop %v1087
      %v1097 = vmul.f32 %v1095, %v1003
      %1099 = vrot.lane.b32.xlu0 %v1096, 80
      %v1100 = vpop.permute.xlu0 %1099
      %v1102 = vmul.f32 %v1095, %v1100
      %1104 = vrot.lane.b32.xlu0 %v1102, 16
      %v1105 = vpop.permute.xlu0 %1104
      %v1107 = vadd.f32 %v1097, %v1105
      %v1108 = vtanh.pop %v1107
      %1110 = vrot.lane.b32.xlu0 %v1108, 16
      %v1111 = vpop.permute.xlu0 %1110
      %v1113 = vmul.f32 %v1095, %v1111
      %v1114 = vstv %s1012
      %vm1115 = vcmp.lt.s32.totalorder %v1114, %v288
      %v1116 = vsel %vm1115, 1, 0
      %1117 = vset.pattern.permute.xlu0 0
      %1118 = vperm.xlu0 %1117, %v1116
      %v1119 = vpop.permute.xlu0 %1118
      %vm1120 = vcmp.eq.s32.totalorder %v1119, 1
      %v1121 = vsel %vm1120, %v1107, %v1003
      %v1122 = vsel %vm1120, %v1113, %v1004
      %v1123 = vsel %vm1120, %v1113, 0.0
      %1125 = vrot.lane.b32.xlu0 %v1123, 96
      %v1126 = vpop.permute.xlu0 %1125
      %s1128 = scalar_lea.vmem %s278, %s1013
      %1129 = vst.msk [vmem:[%s1128] sm:$0x3] %vm420, %v1126
      %s1130 = scalar_select %p287, 0, 7
      %s1131 = smul.u32 %s1130, 2
      %s1132 = scalar_lea.vmem %s1, %s1131
      %v1133 = vld [vmem:[%s1132] sm:$0x3]
      %v1134 = vsel %vm300, %v1133, %v1122
      %v1136 = vsel %vm308, %v1134, 0
      %1138 = vmatprep.subr.mxu0 0.0
      %1139 = vmatpush1.msra.mxu0 %v289
      %1140 = vmatprep.subr.mxu0 0.0
      %1141 = vmatpush1.msra.mxu0 %v290
      %1142 = vmatprep.subr.mxu0 0.0
      %1143 = vmatpush1.msra.mxu0 %v291
      %1144 = vmatprep.subr.mxu0 0.0
      %1145 = vmatpush1.msra.mxu0 %v292
      %1146 = vmatprep.subr.mxu0 0.0
      %1147 = vmatpush1.msra.mxu0 %v293
      %1148 = vmatprep.subr.mxu0 0.0
      %1149 = vmatpush1.msra.mxu0 %v294
      %1150 = vmatprep.subr.mxu0 0.0
      %1151 = vmatpush1.msra.mxu0 0.0
      %1152 = vmatprep.subr.mxu0 0.0
      %1153 = vmatpush1.msra.mxu0 0.0
      %1154 = vmatprep.subr.mxu0 0.0
      %1155 = vmatpush1.msra.mxu0 0.0
      %1156 = vmatprep.subr.mxu0 0.0
      %1157 = vmatpush1.msra.mxu0 0.0
      %1158 = vmatprep.subr.mxu0 0.0
      %1159 = vmatpush1.msra.mxu0 0.0
      %1160 = vmatprep.subr.mxu0 0.0
      %1161 = vmatpush1.msra.mxu0 0.0
      %1162 = vmatprep.subr.mxu0 0.0
      %1163 = vmatpush1.msra.mxu0 0.0
      %1164 = vmatprep.subr.mxu0 0.0
      %1165 = vmatpush1.msra.mxu0 0.0
      %1166 = vmatprep.subr.mxu0 0.0
      %1167 = vmatpush1.msra.mxu0 0.0
      %1168 = vmatprep.subr.mxu0 0.0
      %1169 = vmatpush1.msra.mxu0 0.0
      %1170 = vmatprep.subr.mxu0 0.0
      %1171 = vmatpush1.msra.mxu0 0.0
      %1172 = vmatprep.subr.mxu0 0.0
      %1173 = vmatpush1.msra.mxu0 0.0
      %1174 = vmatprep.subr.mxu0 0.0
      %1175 = vmatpush1.msra.mxu0 0.0
      %1176 = vmatprep.subr.mxu0 0.0
      %1177 = vmatpush1.msra.mxu0 0.0
      %1178 = vmatprep.subr.mxu0 0.0
      %1179 = vmatpush1.msra.mxu0 0.0
      %1180 = vmatprep.subr.mxu0 0.0
      %1181 = vmatpush1.msra.mxu0 0.0
      %1182 = vmatprep.subr.mxu0 0.0
      %1183 = vmatpush1.msra.mxu0 0.0
      %1184 = vmatprep.subr.mxu0 0.0
      %1185 = vmatpush1.msra.mxu0 0.0
      %1186 = vmatprep.subr.mxu0 0.0
      %1187 = vmatpush1.msra.mxu0 0.0
      %1188 = vmatprep.subr.mxu0 0.0
      %1189 = vmatpush1.msra.mxu0 0.0
      %1190 = vmatprep.subr.mxu0 0.0
      %1191 = vmatpush1.msra.mxu0 0.0
      %1192 = vmatprep.subr.mxu0 0.0
      %1193 = vmatpush1.msra.mxu0 0.0
      %1194 = vmatprep.subr.mxu0 0.0
      %1195 = vmatpush1.msra.mxu0 0.0
      %1196 = vmatprep.subr.mxu0 0.0
      %1197 = vmatpush1.msra.mxu0 0.0
      %1198 = vmatprep.subr.mxu0 0.0
      %1199 = vmatpush1.msra.mxu0 0.0
      %1200 = vmatprep.subr.mxu0 0.0
      %1201 = vmatpush1.msra.mxu0 0.0
      %1202 = vmatprep.mubr.f32.mxu0 0.0
      %1203 = vmatmul.mubr.f32.gmra.mrb[0].mxu0 %v1136
      %v1204 = vpop.f32.mrb[0].mxu0
      %v1205 = vadd.f32 %v306, %v1204
      %v1206 = vpop.f32.mrb[0].mxu0
      %1207 = vdwg.mxu0
      %v1208 = vxor.u32 %v1205, 2147483648
      %v1209 = vmul.f32 %v1208, 1.442695
      %v1210 = vpow.pop %v1209
      %v1211 = vadd.f32 %v1210, 1.0
      %v1212 = vrcp.pop %v1211
      %v1213 = vmul.f32 1.0, %v1212
      %v1214 = vtanh.pop %v1205
      %v1215 = vmul.f32 %v1213, %v1121
      %1217 = vrot.lane.b32.xlu0 %v1214, 80
      %v1218 = vpop.permute.xlu0 %1217
      %v1220 = vmul.f32 %v1213, %v1218
      %1222 = vrot.lane.b32.xlu0 %v1220, 16
      %v1223 = vpop.permute.xlu0 %1222
      %v1225 = vadd.f32 %v1215, %v1223
      %v1226 = vtanh.pop %v1225
      %1228 = vrot.lane.b32.xlu0 %v1226, 16
      %v1229 = vpop.permute.xlu0 %1228
      %v1231 = vmul.f32 %v1213, %v1229
      %v1232 = vstv %s1130
      %vm1233 = vcmp.lt.s32.totalorder %v1232, %v288
      %v1234 = vsel %vm1233, 1, 0
      %1235 = vset.pattern.permute.xlu0 0
      %1236 = vperm.xlu0 %1235, %v1234
      %v1237 = vpop.permute.xlu0 %1236
      %vm1238 = vcmp.eq.s32.totalorder %v1237, 1
      %v1239 = vsel %vm1238, %v1225, %v1121
      %v1240 = vsel %vm1238, %v1231, %v1122
      %v1241 = vsel %vm1238, %v1231, 0.0
      %1243 = vrot.lane.b32.xlu0 %v1241, 96
      %v1244 = vpop.permute.xlu0 %1243
      %s1246 = scalar_lea.vmem %s278, %s1131
      %1247 = vst.msk [vmem:[%s1246] sm:$0x3] %vm420, %v1244
      %1249 = vrot.lane.b32.xlu0 %v1240, 96
      %v1250 = vpop.permute.xlu0 %1249
      %1252 = vst.msk [vmem:[%s282] sm:$0x3] %vm420, %v1250
      %1254 = vrot.lane.b32.xlu0 %v1239, 112
      %v1255 = vpop.permute.xlu0 %1254
      %1257 = vst.msk [vmem:[%s286] sm:$0x3] %vm420, %v1255
      %p1258 = scmp.lt.s32.totalorder %s18, 1
      %s1259 = scalar_select %p1258, %s18, 1
      %s1260 = smul.addr %s1259, 8
      %s1261 = smul.addr %s1260, 2
      %s1262 = scalar_lea.vmem %s4, %s1261
      %p1263 = scmp.lt.s32.totalorder %s18, 1
      %s1264 = scalar_select %p1263, %s18, 1
      %s1265 = smul.addr %s1264, 2
      %s1266 = scalar_lea.vmem %s5, %s1265
      %p1267 = scmp.lt.s32.totalorder %s18, 1
      %s1268 = scalar_select %p1267, %s18, 1
      %s1269 = smul.addr %s1268, 2
      %s1270 = scalar_lea.vmem %s6, %s1269
      // Predicated region
      $region37: #{encoder_forward.2} parent=35 // pred_check
        %p1271 = pneg %p130
      $region38: #{encoder_forward.2} parent=35 // pred_check_branch
        %1273 = sbr.rel (%p1271) target = $region40
      $region39: #{encoder_forward.2} parent=35 // pred_region
        _
      $region40: #{encoder_forward.2} parent=35 // pred_fallthru
        _
      // Predicated region
      $region41: #{encoder_forward.2} parent=35 // pred_check
        %p1274 = pneg %p156
      $region42: #{encoder_forward.2} parent=35 // pred_check_branch
        %1276 = sbr.rel (%p1274) target = $region44
      $region43: #{encoder_forward.2} parent=35 // pred_region
        _
      $region44: #{encoder_forward.2} parent=35 // pred_fallthru
        _
      // Predicated region
      $region45: #{encoder_forward.2} parent=35 // pred_check
        %p1277 = pneg %p182
      $region46: #{encoder_forward.2} parent=35 // pred_check_branch
        %1279 = sbr.rel (%p1277) target = $region48
      $region47: #{encoder_forward.2} parent=35 // pred_region
        _
      $region48: #{encoder_forward.2} parent=35 // pred_fallthru
        _
    $region36: #{encoder_forward.2} parent=5 // pred_fallthru
      _
    %p1280 = scmp.le.s32.totalorder 2, %s13
    // Predicated region
    $region49: #{encoder_forward.2} parent=5 // pred_check
      %p1281 = pneg %p1280
    $region50: #{encoder_forward.2} parent=5 // pred_check_branch
      %1283 = sbr.rel (%p1281) target = $region52
    $region51: #{encoder_forward.2} parent=5 // pred_region
      %s1284 = ssub.s32 %s13, 2
      // Predicated region
      $region53: #{encoder_forward.2} parent=51 // pred_check
        %p1285 = pneg %p136
      $region54: #{encoder_forward.2} parent=51 // pred_check_branch
        %1287 = sbr.rel (%p1285) target = $region56
      $region55: #{encoder_forward.2} parent=51 // pred_region
        %p1288 = scmp.lt.s32.totalorder %s19, 1
        %s1289 = scalar_select %p1288, %s19, 1
        %s1290 = smul.addr %s1289, 8
        %s1291 = smul.addr %s1290, 2
        %s1292 = scalar_lea.vmem %s4, %s1291
      $region56: #{encoder_forward.2} parent=51 // pred_fallthru
        _
      // Predicated region
      $region57: #{encoder_forward.2} parent=51 // pred_check
        %p1293 = pneg %p162
      $region58: #{encoder_forward.2} parent=51 // pred_check_branch
        %1295 = sbr.rel (%p1293) target = $region60
      $region59: #{encoder_forward.2} parent=51 // pred_region
        %p1296 = scmp.lt.s32.totalorder %s19, 1
        %s1297 = scalar_select %p1296, %s19, 1
        %s1298 = smul.addr %s1297, 2
        %s1299 = scalar_lea.vmem %s5, %s1298
      $region60: #{encoder_forward.2} parent=51 // pred_fallthru
        _
      // Predicated region
      $region61: #{encoder_forward.2} parent=51 // pred_check
        %p1300 = pneg %p188
      $region62: #{encoder_forward.2} parent=51 // pred_check_branch
        %1302 = sbr.rel (%p1300) target = $region64
      $region63: #{encoder_forward.2} parent=51 // pred_region
        %p1303 = scmp.lt.s32.totalorder %s19, 1
        %s1304 = scalar_select %p1303, %s19, 1
        %s1305 = smul.addr %s1304, 2
        %s1306 = scalar_lea.vmem %s6, %s1305
      $region64: #{encoder_forward.2} parent=51 // pred_fallthru
        _
    $region52: #{encoder_forward.2} parent=5 // pred_fallthru
      _
  $region6: #{encoder_forward.2} parent=0 // loop_footer
    %s17 = sadd.s32 1, %s13
  $region7: #{encoder_forward.2} parent=0 // loop_footer_branch
    %12 = sbr.rel target = $region3
  $region8: #{encoder_forward.2} parent=0 // loop_exit
    _

</llo_original>
